<compile_context>
chip_gen: v5e
topology: v5e:2x2
jax: 0.10.0
libtpu: 0.0.40
codegen_flags: <defaults>
</compile_context>

<pallas_src>
import functools
import math

import jax
import jax.numpy as jnp
from jax.experimental import pallas as pl
from jax.experimental.pallas import tpu as pltpu

# ---- small synthetic BERT config (shapes implied by the module, scaled down) ----
VOCAB = 100
TYPE_VOCAB = 2
MAX_POS = 16
HIDDEN = 32
N_HEADS = 4
HEAD_DIM = HIDDEN // N_HEADS
INTER = 64
N_LAYERS = 2
N_LABELS = 2
LN_EPS = 1e-12
LANE = 128  # lane-dense padded width for the classifier output


# ------------------------- fused forward kernel -------------------------

def _bert_fwd_kernel(emb_ref, eg_ref, eb_ref,
                     wqkv_ref, bqkv_ref, wo_ref, bo_ref,
                     ln1g_ref, ln1b_ref,
                     wi_ref, bi_ref, wf_ref, bf_ref,
                     ln2g_ref, ln2b_ref,
                     poolw_ref, poolb_ref, clsw_ref, clsb_ref,
                     o_ref, *, n_layers, batch, seq, n_heads, head_dim, eps):
    """Whole BERT forward on one (batch*seq, hidden) activation slab in VMEM."""
    hidden = n_heads * head_dim
    m = batch * seq
    scale = 1.0 / math.sqrt(head_dim)

    def layernorm(x, g, b):
        mu = jnp.mean(x, axis=-1, keepdims=True)
        d = x - mu
        var = jnp.mean(d * d, axis=-1, keepdims=True)
        return d * jax.lax.rsqrt(var + eps) * g + b

    def gelu(x):
        # TODO(synk): HF BERT default is erf-GELU; tanh approximation used here.
        return 0.5 * x * (1.0 + jnp.tanh(
            0.7978845608028654 * (x + 0.044715 * x * x * x)))

    # Embedding sum was computed outside (gather is XLA glue); LN fused here.
    h = layernorm(emb_ref[...], eg_ref[...], eb_ref[...])          # (M, H)

    for l in range(n_layers):                                      # unrolled
        # ---- fused QKV projection: one (M,H) x (H,3H) matmul ----
        qkv = jnp.dot(h, wqkv_ref[l],
                      preferred_element_type=jnp.float32) + bqkv_ref[l]
        q = qkv[:, 0 * hidden:1 * hidden].reshape(batch, seq, hidden)
        k = qkv[:, 1 * hidden:2 * hidden].reshape(batch, seq, hidden)
        v = qkv[:, 2 * hidden:3 * hidden].reshape(batch, seq, hidden)

        # ---- attention: all batches at once, heads unrolled in-kernel ----
        # Head merge is folded into the output projection:
        #   ctx @ Wo == sum_h ctx_h @ Wo[h*Dh:(h+1)*Dh, :]
        wo_l = wo_ref[l]                                            # (H, H)
        attn_out = bo_ref[l]                                        # (1, H)
        for hh in range(n_heads):
            lo, hi = hh * head_dim, (hh + 1) * head_dim
            qh, kh, vh = q[:, :, lo:hi], k[:, :, lo:hi], v[:, :, lo:hi]
            s = jnp.einsum('bqd,bkd->bqk', qh, kh,
                           preferred_element_type=jnp.float32) * scale
            s = s - jnp.max(s, axis=-1, keepdims=True)
            p = jnp.exp(s)
            p = p * pl.reciprocal(jnp.sum(p, axis=-1, keepdims=True),
                                  approx=True)
            ctx_h = jnp.einsum('bqk,bkd->bqd', p, vh,
                               preferred_element_type=jnp.float32)
            attn_out = attn_out + jnp.dot(
                ctx_h.reshape(m, head_dim), wo_l[lo:hi, :],
                preferred_element_type=jnp.float32)

        h = layernorm(attn_out + h, ln1g_ref[l], ln1b_ref[l])

        # ---- feed-forward ----
        inter = gelu(jnp.dot(h, wi_ref[l],
                             preferred_element_type=jnp.float32) + bi_ref[l])
        ffn = jnp.dot(inter, wf_ref[l],
                      preferred_element_type=jnp.float32) + bf_ref[l]
        h = layernorm(ffn + h, ln2g_ref[l], ln2b_ref[l])

    # ---- pooler (tanh on [CLS]) + classifier (lane-padded to 128) ----
    cls_tok = h.reshape(batch, seq, hidden)[:, 0, :]                # (B, H)
    pooled = jnp.tanh(
        jnp.dot(cls_tok, poolw_ref[...],
                preferred_element_type=jnp.float32) + poolb_ref[...])
    # TODO(synk): HF applies dropout before the classifier; identity in eval.
    o_ref[...] = jnp.dot(pooled, clsw_ref[...],
                         preferred_element_type=jnp.float32) + clsb_ref[...]


# ------------------------- parameters -------------------------

def init_params(key):
    keys = iter(jax.random.split(key, 64))

    def nrm(shape):
        return (0.02 * jax.random.normal(next(keys), shape)).astype(jnp.float32)

    params = {
        "word_emb": nrm((VOCAB, HIDDEN)),
        "pos_emb": nrm((MAX_POS, HIDDEN)),
        "type_emb": nrm((TYPE_VOCAB, HIDDEN)),
        "emb_ln_g": jnp.ones((HIDDEN,), jnp.float32),
        "emb_ln_b": jnp.zeros((HIDDEN,), jnp.float32),
        "pool_w": nrm((HIDDEN, HIDDEN)),
        "pool_b": jnp.zeros((HIDDEN,), jnp.float32),
        "cls_w": nrm((HIDDEN, N_LABELS)),
        "cls_b": jnp.zeros((N_LABELS,), jnp.float32),
        "layers": [],
    }
    for _ in range(N_LAYERS):
        params["layers"].append({
            "wq": nrm((HIDDEN, HIDDEN)), "bq": jnp.zeros((HIDDEN,), jnp.float32),
            "wk": nrm((HIDDEN, HIDDEN)), "bk": jnp.zeros((HIDDEN,), jnp.float32),
            "wv": nrm((HIDDEN, HIDDEN)), "bv": jnp.zeros((HIDDEN,), jnp.float32),
            "wo": nrm((HIDDEN, HIDDEN)), "bo": jnp.zeros((HIDDEN,), jnp.float32),
            "ln1_g": jnp.ones((HIDDEN,), jnp.float32),
            "ln1_b": jnp.zeros((HIDDEN,), jnp.float32),
            "wi": nrm((HIDDEN, INTER)), "bi": jnp.zeros((INTER,), jnp.float32),
            "wf": nrm((INTER, HIDDEN)), "bf": jnp.zeros((HIDDEN,), jnp.float32),
            "ln2_g": jnp.ones((HIDDEN,), jnp.float32),
            "ln2_b": jnp.zeros((HIDDEN,), jnp.float32),
        })
    return params


def _pack_params(params):
    """Stack per-layer weights with a leading layer dim; fuse wq|wk|wv; pad cls."""
    ls = params["layers"]

    def stack(name, as_row=False):
        arrs = [lp[name] for lp in ls]
        if as_row:
            arrs = [a[None, :] for a in arrs]
        return jnp.stack(arrs)

    packed = {
        "wqkv": jnp.stack([jnp.concatenate([lp["wq"], lp["wk"], lp["wv"]],
                                           axis=1) for lp in ls]),      # (L,H,3H)
        "bqkv": jnp.stack([jnp.concatenate([lp["bq"], lp["bk"], lp["bv"]])[None, :]
                           for lp in ls]),                              # (L,1,3H)
        "wo": stack("wo"), "bo": stack("bo", True),
        "ln1_g": stack("ln1_g", True), "ln1_b": stack("ln1_b", True),
        "wi": stack("wi"), "bi": stack("bi", True),
        "wf": stack("wf"), "bf": stack("bf", True),
        "ln2_g": stack("ln2_g", True), "ln2_b": stack("ln2_b", True),
        "emb_ln_g": params["emb_ln_g"][None, :],
        "emb_ln_b": params["emb_ln_b"][None, :],
        "pool_w": params["pool_w"],
        "pool_b": params["pool_b"][None, :],
        # Pad classifier to 128 output lanes (lane-dense store in the kernel).
        "cls_w": jnp.zeros((HIDDEN, LANE), jnp.float32)
                    .at[:, :N_LABELS].set(params["cls_w"]),
        "cls_b": jnp.zeros((1, LANE), jnp.float32)
                    .at[0, :N_LABELS].set(params["cls_b"]),
    }
    return packed


# ------------------------- forward (BertForSequenceClassification) -------------------------

@jax.jit
def bert_classification_forward(params, input_ids):
    """Returns logits (B, N_LABELS) == output[0] of BertForSequenceClassification."""
    B, S = input_ids.shape
    M = B * S
    packed = _pack_params(params)

    # Embedding gathers stay in XLA (glue); sum is a trivial elementwise add.
    we = jnp.take(params["word_emb"], input_ids, axis=0)          # (B,S,H)
    pe = params["pos_emb"][:S][None, :, :]                        # (1,S,H)
    te = params["type_emb"][0][None, None, :]                     # (1,1,H)  token_type_ids=0
    emb = (we + pe + te).reshape(M, HIDDEN).astype(jnp.float32)
    # attention_mask defaults to all-ones in HF, so it is a no-op here.

    vmem = pl.BlockSpec(memory_space=pltpu.MemorySpace.VMEM)
    kernel = functools.partial(
        _bert_fwd_kernel, n_layers=N_LAYERS, batch=B, seq=S,
        n_heads=N_HEADS, head_dim=HEAD_DIM, eps=LN_EPS)

    operands = (
        emb, packed["emb_ln_g"], packed["emb_ln_b"],
        packed["wqkv"], packed["bqkv"], packed["wo"], packed["bo"],
        packed["ln1_g"], packed["ln1_b"],
        packed["wi"], packed["bi"], packed["wf"], packed["bf"],
        packed["ln2_g"], packed["ln2_b"],
        packed["pool_w"], packed["pool_b"], packed["cls_w"], packed["cls_b"],
    )

    logits_pad = pl.pallas_call(
        kernel,
        out_shape=jax.ShapeDtypeStruct((B, LANE), jnp.float32),
        in_specs=[vmem] * len(operands),
        out_specs=vmem,
    )(*operands)

    return logits_pad[:, :N_LABELS]


if __name__ == "__main__":
    key = jax.random.PRNGKey(0)
    k_param, k_ids = jax.random.split(key)
    params = init_params(k_param)
    # x corresponds to the module's `x`: a (batch, seq) tensor of token ids.
    input_ids = jax.random.randint(k_ids, (2, 8), 0, VOCAB, dtype=jnp.int32)
    logits = bert_classification_forward(params, input_ids)
    jax.block_until_ready(logits)
    assert logits.shape == (2, N_LABELS) and logits.dtype == jnp.float32
    print("KERNEL_OK")
</pallas_src>

<mosaic_0001>
module attributes {stable_mosaic.version = 11 : i64} {
  func.func @_bert_fwd_kernel(%arg0: memref<16x32xf32, #tpu.memory_space<vmem>>, %arg1: memref<1x32xf32, #tpu.memory_space<vmem>>, %arg2: memref<1x32xf32, #tpu.memory_space<vmem>>, %arg3: memref<2x32x96xf32, #tpu.memory_space<vmem>>, %arg4: memref<2x1x96xf32, #tpu.memory_space<vmem>>, %arg5: memref<2x32x32xf32, #tpu.memory_space<vmem>>, %arg6: memref<2x1x32xf32, #tpu.memory_space<vmem>>, %arg7: memref<2x1x32xf32, #tpu.memory_space<vmem>>, %arg8: memref<2x1x32xf32, #tpu.memory_space<vmem>>, %arg9: memref<2x32x64xf32, #tpu.memory_space<vmem>>, %arg10: memref<2x1x64xf32, #tpu.memory_space<vmem>>, %arg11: memref<2x64x32xf32, #tpu.memory_space<vmem>>, %arg12: memref<2x1x32xf32, #tpu.memory_space<vmem>>, %arg13: memref<2x1x32xf32, #tpu.memory_space<vmem>>, %arg14: memref<2x1x32xf32, #tpu.memory_space<vmem>>, %arg15: memref<32x32xf32, #tpu.memory_space<vmem>>, %arg16: memref<1x32xf32, #tpu.memory_space<vmem>>, %arg17: memref<32x128xf32, #tpu.memory_space<vmem>>, %arg18: memref<1x128xf32, #tpu.memory_space<vmem>>, %arg19: memref<2x128xf32, #tpu.memory_space<vmem>>) attributes {dimension_semantics = [], scalar_prefetch = 0 : i64, scratch_operands = 0 : i64, tpu.core_type = #tpu.core_type<tc>} {
    %c0 = arith.constant 0 : index
    %c0_0 = arith.constant 0 : index
    %0 = vector.load %arg0[%c0, %c0_0] : memref<16x32xf32, #tpu.memory_space<vmem>>, vector<16x32xf32>
    %c0_1 = arith.constant 0 : index
    %c0_2 = arith.constant 0 : index
    %1 = vector.load %arg1[%c0_1, %c0_2] : memref<1x32xf32, #tpu.memory_space<vmem>>, vector<1x32xf32>
    %c0_3 = arith.constant 0 : index
    %c0_4 = arith.constant 0 : index
    %2 = vector.load %arg2[%c0_3, %c0_4] : memref<1x32xf32, #tpu.memory_space<vmem>>, vector<1x32xf32>
    %cst = arith.constant dense<0.000000e+00> : vector<16xf32>
    %3 = vector.multi_reduction <add>, %0, %cst [1] : vector<16x32xf32> to vector<16xf32>
    %4 = vector.shape_cast %3 : vector<16xf32> to vector<16x1xf32>
    %cst_5 = arith.constant 3.200000e+01 : f32
    %5 = vector.broadcast %cst_5 : f32 to vector<16x1xf32>
    %6 = arith.divf %4, %5 : vector<16x1xf32>
    %7 = vector.broadcast %6 : vector<16x1xf32> to vector<16x32xf32>
    %8 = arith.subf %0, %7 : vector<16x32xf32>
    %9 = arith.mulf %8, %8 : vector<16x32xf32>
    %cst_6 = arith.constant dense<0.000000e+00> : vector<16xf32>
    %10 = vector.multi_reduction <add>, %9, %cst_6 [1] : vector<16x32xf32> to vector<16xf32>
    %11 = vector.shape_cast %10 : vector<16xf32> to vector<16x1xf32>
    %cst_7 = arith.constant 3.200000e+01 : f32
    %12 = vector.broadcast %cst_7 : f32 to vector<16x1xf32>
    %13 = arith.divf %11, %12 : vector<16x1xf32>
    %cst_8 = arith.constant 9.99999996E-13 : f32
    %14 = vector.broadcast %cst_8 : f32 to vector<16x1xf32>
    %15 = arith.addf %13, %14 : vector<16x1xf32>
    %16 = math.rsqrt %15 : vector<16x1xf32>
    %17 = vector.broadcast %16 : vector<16x1xf32> to vector<16x32xf32>
    %18 = arith.mulf %8, %17 : vector<16x32xf32>
    %19 = vector.broadcast %1 : vector<1x32xf32> to vector<16x32xf32>
    %20 = arith.mulf %18, %19 : vector<16x32xf32>
    %21 = vector.broadcast %2 : vector<1x32xf32> to vector<16x32xf32>
    %22 = arith.addf %20, %21 : vector<16x32xf32>
    %c0_9 = arith.constant 0 : index
    %c0_10 = arith.constant 0 : index
    %c0_11 = arith.constant 0 : index
    %23 = vector.load %arg3[%c0_9, %c0_10, %c0_11] : memref<2x32x96xf32, #tpu.memory_space<vmem>>, vector<1x32x96xf32>
    %24 = vector.shape_cast %23 : vector<1x32x96xf32> to vector<32x96xf32>
    %cst_12 = arith.constant dense<0.000000e+00> : vector<16x96xf32>
    %25 = tpu.matmul %22, %24, %cst_12 {dimension_numbers = #tpu.dot_dimension_numbers<[1], [0], [0], [1], [0, 0, 1, 1], [], []>} : vector<16x32xf32>, vector<32x96xf32>, vector<16x96xf32> -> vector<16x96xf32>
    %c0_13 = arith.constant 0 : index
    %c0_14 = arith.constant 0 : index
    %c0_15 = arith.constant 0 : index
    %26 = vector.load %arg4[%c0_13, %c0_14, %c0_15] : memref<2x1x96xf32, #tpu.memory_space<vmem>>, vector<1x1x96xf32>
    %27 = vector.shape_cast %26 : vector<1x1x96xf32> to vector<1x96xf32>
    %28 = vector.broadcast %27 : vector<1x96xf32> to vector<16x96xf32>
    %29 = arith.addf %25, %28 : vector<16x96xf32>
    %30 = vector.extract_strided_slice %29 {offsets = [0, 0], sizes = [16, 32], strides = [1, 1]} : vector<16x96xf32> to vector<16x32xf32>
    %31 = vector.shape_cast %30 : vector<16x32xf32> to vector<2x8x32xf32>
    %32 = vector.extract_strided_slice %29 {offsets = [0, 32], sizes = [16, 32], strides = [1, 1]} : vector<16x96xf32> to vector<16x32xf32>
    %33 = vector.shape_cast %32 : vector<16x32xf32> to vector<2x8x32xf32>
    %34 = vector.extract_strided_slice %29 {offsets = [0, 64], sizes = [16, 32], strides = [1, 1]} : vector<16x96xf32> to vector<16x32xf32>
    %35 = vector.shape_cast %34 : vector<16x32xf32> to vector<2x8x32xf32>
    %c0_16 = arith.constant 0 : index
    %c0_17 = arith.constant 0 : index
    %c0_18 = arith.constant 0 : index
    %36 = vector.load %arg5[%c0_16, %c0_17, %c0_18] : memref<2x32x32xf32, #tpu.memory_space<vmem>>, vector<1x32x32xf32>
    %37 = vector.shape_cast %36 : vector<1x32x32xf32> to vector<32x32xf32>
    %c0_19 = arith.constant 0 : index
    %c0_20 = arith.constant 0 : index
    %c0_21 = arith.constant 0 : index
    %38 = vector.load %arg6[%c0_19, %c0_20, %c0_21] : memref<2x1x32xf32, #tpu.memory_space<vmem>>, vector<1x1x32xf32>
    %39 = vector.shape_cast %38 : vector<1x1x32xf32> to vector<1x32xf32>
    %40 = vector.extract_strided_slice %31 {offsets = [0, 0, 0], sizes = [2, 8, 8], strides = [1, 1, 1]} : vector<2x8x32xf32> to vector<2x8x8xf32>
    %41 = vector.extract_strided_slice %33 {offsets = [0, 0, 0], sizes = [2, 8, 8], strides = [1, 1, 1]} : vector<2x8x32xf32> to vector<2x8x8xf32>
    %42 = vector.extract_strided_slice %35 {offsets = [0, 0, 0], sizes = [2, 8, 8], strides = [1, 1, 1]} : vector<2x8x32xf32> to vector<2x8x8xf32>
    "tpu.trace_start"() <{level = 10 : i32, message = "bqd,bkd->bqk"}> : () -> ()
    %cst_22 = arith.constant dense<0.000000e+00> : vector<2x8x8xf32>
    %43 = tpu.matmul %40, %41, %cst_22 {dimension_numbers = #tpu.dot_dimension_numbers<[2], [2], [1], [1], [0, 0, 0, 1, 1, 1], [0], [0]>} : vector<2x8x8xf32>, vector<2x8x8xf32>, vector<2x8x8xf32> -> vector<2x8x8xf32>
    "tpu.trace_stop"() : () -> ()
    %cst_23 = arith.constant 0.353553385 : f32
    %44 = vector.broadcast %cst_23 : f32 to vector<2x8x8xf32>
    %45 = arith.mulf %43, %44 : vector<2x8x8xf32>
    %cst_24 = arith.constant dense<0xFF800000> : vector<2x8xf32>
    %46 = vector.multi_reduction <maximumf>, %45, %cst_24 [2] : vector<2x8x8xf32> to vector<2x8xf32>
    %47 = vector.shape_cast %46 : vector<2x8xf32> to vector<2x8x1xf32>
    %48 = vector.broadcast %47 : vector<2x8x1xf32> to vector<2x8x8xf32>
    %49 = arith.subf %45, %48 : vector<2x8x8xf32>
    %50 = math.exp %49 : vector<2x8x8xf32>
    %cst_25 = arith.constant dense<0.000000e+00> : vector<2x8xf32>
    %51 = vector.multi_reduction <add>, %50, %cst_25 [2] : vector<2x8x8xf32> to vector<2x8xf32>
    %52 = vector.shape_cast %51 : vector<2x8xf32> to vector<2x8x1xf32>
    %53 = tpu.reciprocal %52 {approx = true} : vector<2x8x1xf32> -> vector<2x8x1xf32>
    %54 = vector.broadcast %53 : vector<2x8x1xf32> to vector<2x8x8xf32>
    %55 = arith.mulf %50, %54 : vector<2x8x8xf32>
    "tpu.trace_start"() <{level = 10 : i32, message = "bqk,bkd->bqd"}> : () -> ()
    %cst_26 = arith.constant dense<0.000000e+00> : vector<2x8x8xf32>
    %56 = tpu.matmul %55, %42, %cst_26 {dimension_numbers = #tpu.dot_dimension_numbers<[2], [1], [1], [2], [0, 0, 0, 1, 1, 2], [0], [0]>} : vector<2x8x8xf32>, vector<2x8x8xf32>, vector<2x8x8xf32> -> vector<2x8x8xf32>
    "tpu.trace_stop"() : () -> ()
    %57 = vector.shape_cast %56 : vector<2x8x8xf32> to vector<16x8xf32>
    %58 = vector.extract_strided_slice %37 {offsets = [0, 0], sizes = [8, 32], strides = [1, 1]} : vector<32x32xf32> to vector<8x32xf32>
    %cst_27 = arith.constant dense<0.000000e+00> : vector<16x32xf32>
    %59 = tpu.matmul %57, %58, %cst_27 {dimension_numbers = #tpu.dot_dimension_numbers<[1], [0], [0], [1], [0, 0, 1, 1], [], []>} : vector<16x8xf32>, vector<8x32xf32>, vector<16x32xf32> -> vector<16x32xf32>
    %60 = vector.broadcast %39 : vector<1x32xf32> to vector<16x32xf32>
    %61 = arith.addf %60, %59 : vector<16x32xf32>
    %62 = vector.extract_strided_slice %31 {offsets = [0, 0, 8], sizes = [2, 8, 8], strides = [1, 1, 1]} : vector<2x8x32xf32> to vector<2x8x8xf32>
    %63 = vector.extract_strided_slice %33 {offsets = [0, 0, 8], sizes = [2, 8, 8], strides = [1, 1, 1]} : vector<2x8x32xf32> to vector<2x8x8xf32>
    %64 = vector.extract_strided_slice %35 {offsets = [0, 0, 8], sizes = [2, 8, 8], strides = [1, 1, 1]} : vector<2x8x32xf32> to vector<2x8x8xf32>
    "tpu.trace_start"() <{level = 10 : i32, message = "bqd,bkd->bqk"}> : () -> ()
    %cst_28 = arith.constant dense<0.000000e+00> : vector<2x8x8xf32>
    %65 = tpu.matmul %62, %63, %cst_28 {dimension_numbers = #tpu.dot_dimension_numbers<[2], [2], [1], [1], [0, 0, 0, 1, 1, 1], [0], [0]>} : vector<2x8x8xf32>, vector<2x8x8xf32>, vector<2x8x8xf32> -> vector<2x8x8xf32>
    "tpu.trace_stop"() : () -> ()
    %cst_29 = arith.constant 0.353553385 : f32
    %66 = vector.broadcast %cst_29 : f32 to vector<2x8x8xf32>
    %67 = arith.mulf %65, %66 : vector<2x8x8xf32>
    %cst_30 = arith.constant dense<0xFF800000> : vector<2x8xf32>
    %68 = vector.multi_reduction <maximumf>, %67, %cst_30 [2] : vector<2x8x8xf32> to vector<2x8xf32>
    %69 = vector.shape_cast %68 : vector<2x8xf32> to vector<2x8x1xf32>
    %70 = vector.broadcast %69 : vector<2x8x1xf32> to vector<2x8x8xf32>
    %71 = arith.subf %67, %70 : vector<2x8x8xf32>
    %72 = math.exp %71 : vector<2x8x8xf32>
    %cst_31 = arith.constant dense<0.000000e+00> : vector<2x8xf32>
    %73 = vector.multi_reduction <add>, %72, %cst_31 [2] : vector<2x8x8xf32> to vector<2x8xf32>
    %74 = vector.shape_cast %73 : vector<2x8xf32> to vector<2x8x1xf32>
    %75 = tpu.reciprocal %74 {approx = true} : vector<2x8x1xf32> -> vector<2x8x1xf32>
    %76 = vector.broadcast %75 : vector<2x8x1xf32> to vector<2x8x8xf32>
    %77 = arith.mulf %72, %76 : vector<2x8x8xf32>
    "tpu.trace_start"() <{level = 10 : i32, message = "bqk,bkd->bqd"}> : () -> ()
    %cst_32 = arith.constant dense<0.000000e+00> : vector<2x8x8xf32>
    %78 = tpu.matmul %77, %64, %cst_32 {dimension_numbers = #tpu.dot_dimension_numbers<[2], [1], [1], [2], [0, 0, 0, 1, 1, 2], [0], [0]>} : vector<2x8x8xf32>, vector<2x8x8xf32>, vector<2x8x8xf32> -> vector<2x8x8xf32>
    "tpu.trace_stop"() : () -> ()
    %79 = vector.shape_cast %78 : vector<2x8x8xf32> to vector<16x8xf32>
    %80 = vector.extract_strided_slice %37 {offsets = [8, 0], sizes = [8, 32], strides = [1, 1]} : vector<32x32xf32> to vector<8x32xf32>
    %cst_33 = arith.constant dense<0.000000e+00> : vector<16x32xf32>
    %81 = tpu.matmul %79, %80, %cst_33 {dimension_numbers = #tpu.dot_dimension_numbers<[1], [0], [0], [1], [0, 0, 1, 1], [], []>} : vector<16x8xf32>, vector<8x32xf32>, vector<16x32xf32> -> vector<16x32xf32>
    %82 = arith.addf %61, %81 : vector<16x32xf32>
    %83 = vector.extract_strided_slice %31 {offsets = [0, 0, 16], sizes = [2, 8, 8], strides = [1, 1, 1]} : vector<2x8x32xf32> to vector<2x8x8xf32>
    %84 = vector.extract_strided_slice %33 {offsets = [0, 0, 16], sizes = [2, 8, 8], strides = [1, 1, 1]} : vector<2x8x32xf32> to vector<2x8x8xf32>
    %85 = vector.extract_strided_slice %35 {offsets = [0, 0, 16], sizes = [2, 8, 8], strides = [1, 1, 1]} : vector<2x8x32xf32> to vector<2x8x8xf32>
    "tpu.trace_start"() <{level = 10 : i32, message = "bqd,bkd->bqk"}> : () -> ()
    %cst_34 = arith.constant dense<0.000000e+00> : vector<2x8x8xf32>
    %86 = tpu.matmul %83, %84, %cst_34 {dimension_numbers = #tpu.dot_dimension_numbers<[2], [2], [1], [1], [0, 0, 0, 1, 1, 1], [0], [0]>} : vector<2x8x8xf32>, vector<2x8x8xf32>, vector<2x8x8xf32> -> vector<2x8x8xf32>
    "tpu.trace_stop"() : () -> ()
    %cst_35 = arith.constant 0.353553385 : f32
    %87 = vector.broadcast %cst_35 : f32 to vector<2x8x8xf32>
    %88 = arith.mulf %86, %87 : vector<2x8x8xf32>
    %cst_36 = arith.constant dense<0xFF800000> : vector<2x8xf32>
    %89 = vector.multi_reduction <maximumf>, %88, %cst_36 [2] : vector<2x8x8xf32> to vector<2x8xf32>
    %90 = vector.shape_cast %89 : vector<2x8xf32> to vector<2x8x1xf32>
    %91 = vector.broadcast %90 : vector<2x8x1xf32> to vector<2x8x8xf32>
    %92 = arith.subf %88, %91 : vector<2x8x8xf32>
    %93 = math.exp %92 : vector<2x8x8xf32>
    %cst_37 = arith.constant dense<0.000000e+00> : vector<2x8xf32>
    %94 = vector.multi_reduction <add>, %93, %cst_37 [2] : vector<2x8x8xf32> to vector<2x8xf32>
    %95 = vector.shape_cast %94 : vector<2x8xf32> to vector<2x8x1xf32>
    %96 = tpu.reciprocal %95 {approx = true} : vector<2x8x1xf32> -> vector<2x8x1xf32>
    %97 = vector.broadcast %96 : vector<2x8x1xf32> to vector<2x8x8xf32>
    %98 = arith.mulf %93, %97 : vector<2x8x8xf32>
    "tpu.trace_start"() <{level = 10 : i32, message = "bqk,bkd->bqd"}> : () -> ()
    %cst_38 = arith.constant dense<0.000000e+00> : vector<2x8x8xf32>
    %99 = tpu.matmul %98, %85, %cst_38 {dimension_numbers = #tpu.dot_dimension_numbers<[2], [1], [1], [2], [0, 0, 0, 1, 1, 2], [0], [0]>} : vector<2x8x8xf32>, vector<2x8x8xf32>, vector<2x8x8xf32> -> vector<2x8x8xf32>
    "tpu.trace_stop"() : () -> ()
    %100 = vector.shape_cast %99 : vector<2x8x8xf32> to vector<16x8xf32>
    %101 = vector.extract_strided_slice %37 {offsets = [16, 0], sizes = [8, 32], strides = [1, 1]} : vector<32x32xf32> to vector<8x32xf32>
    %cst_39 = arith.constant dense<0.000000e+00> : vector<16x32xf32>
    %102 = tpu.matmul %100, %101, %cst_39 {dimension_numbers = #tpu.dot_dimension_numbers<[1], [0], [0], [1], [0, 0, 1, 1], [], []>} : vector<16x8xf32>, vector<8x32xf32>, vector<16x32xf32> -> vector<16x32xf32>
    %103 = arith.addf %82, %102 : vector<16x32xf32>
    %104 = vector.extract_strided_slice %31 {offsets = [0, 0, 24], sizes = [2, 8, 8], strides = [1, 1, 1]} : vector<2x8x32xf32> to vector<2x8x8xf32>
    %105 = vector.extract_strided_slice %33 {offsets = [0, 0, 24], sizes = [2, 8, 8], strides = [1, 1, 1]} : vector<2x8x32xf32> to vector<2x8x8xf32>
    %106 = vector.extract_strided_slice %35 {offsets = [0, 0, 24], sizes = [2, 8, 8], strides = [1, 1, 1]} : vector<2x8x32xf32> to vector<2x8x8xf32>
    "tpu.trace_start"() <{level = 10 : i32, message = "bqd,bkd->bqk"}> : () -> ()
    %cst_40 = arith.constant dense<0.000000e+00> : vector<2x8x8xf32>
    %107 = tpu.matmul %104, %105, %cst_40 {dimension_numbers = #tpu.dot_dimension_numbers<[2], [2], [1], [1], [0, 0, 0, 1, 1, 1], [0], [0]>} : vector<2x8x8xf32>, vector<2x8x8xf32>, vector<2x8x8xf32> -> vector<2x8x8xf32>
    "tpu.trace_stop"() : () -> ()
    %cst_41 = arith.constant 0.353553385 : f32
    %108 = vector.broadcast %cst_41 : f32 to vector<2x8x8xf32>
    %109 = arith.mulf %107, %108 : vector<2x8x8xf32>
    %cst_42 = arith.constant dense<0xFF800000> : vector<2x8xf32>
    %110 = vector.multi_reduction <maximumf>, %109, %cst_42 [2] : vector<2x8x8xf32> to vector<2x8xf32>
    %111 = vector.shape_cast %110 : vector<2x8xf32> to vector<2x8x1xf32>
    %112 = vector.broadcast %111 : vector<2x8x1xf32> to vector<2x8x8xf32>
    %113 = arith.subf %109, %112 : vector<2x8x8xf32>
    %114 = math.exp %113 : vector<2x8x8xf32>
    %cst_43 = arith.constant dense<0.000000e+00> : vector<2x8xf32>
    %115 = vector.multi_reduction <add>, %114, %cst_43 [2] : vector<2x8x8xf32> to vector<2x8xf32>
    %116 = vector.shape_cast %115 : vector<2x8xf32> to vector<2x8x1xf32>
    %117 = tpu.reciprocal %116 {approx = true} : vector<2x8x1xf32> -> vector<2x8x1xf32>
    %118 = vector.broadcast %117 : vector<2x8x1xf32> to vector<2x8x8xf32>
    %119 = arith.mulf %114, %118 : vector<2x8x8xf32>
    "tpu.trace_start"() <{level = 10 : i32, message = "bqk,bkd->bqd"}> : () -> ()
    %cst_44 = arith.constant dense<0.000000e+00> : vector<2x8x8xf32>
    %120 = tpu.matmul %119, %106, %cst_44 {dimension_numbers = #tpu.dot_dimension_numbers<[2], [1], [1], [2], [0, 0, 0, 1, 1, 2], [0], [0]>} : vector<2x8x8xf32>, vector<2x8x8xf32>, vector<2x8x8xf32> -> vector<2x8x8xf32>
    "tpu.trace_stop"() : () -> ()
    %121 = vector.shape_cast %120 : vector<2x8x8xf32> to vector<16x8xf32>
    %122 = vector.extract_strided_slice %37 {offsets = [24, 0], sizes = [8, 32], strides = [1, 1]} : vector<32x32xf32> to vector<8x32xf32>
    %cst_45 = arith.constant dense<0.000000e+00> : vector<16x32xf32>
    %123 = tpu.matmul %121, %122, %cst_45 {dimension_numbers = #tpu.dot_dimension_numbers<[1], [0], [0], [1], [0, 0, 1, 1], [], []>} : vector<16x8xf32>, vector<8x32xf32>, vector<16x32xf32> -> vector<16x32xf32>
    %124 = arith.addf %103, %123 : vector<16x32xf32>
    %125 = arith.addf %124, %22 : vector<16x32xf32>
    %c0_46 = arith.constant 0 : index
    %c0_47 = arith.constant 0 : index
    %c0_48 = arith.constant 0 : index
    %126 = vector.load %arg7[%c0_46, %c0_47, %c0_48] : memref<2x1x32xf32, #tpu.memory_space<vmem>>, vector<1x1x32xf32>
    %127 = vector.shape_cast %126 : vector<1x1x32xf32> to vector<1x32xf32>
    %c0_49 = arith.constant 0 : index
    %c0_50 = arith.constant 0 : index
    %c0_51 = arith.constant 0 : index
    %128 = vector.load %arg8[%c0_49, %c0_50, %c0_51] : memref<2x1x32xf32, #tpu.memory_space<vmem>>, vector<1x1x32xf32>
    %129 = vector.shape_cast %128 : vector<1x1x32xf32> to vector<1x32xf32>
    %cst_52 = arith.constant dense<0.000000e+00> : vector<16xf32>
    %130 = vector.multi_reduction <add>, %125, %cst_52 [1] : vector<16x32xf32> to vector<16xf32>
    %131 = vector.shape_cast %130 : vector<16xf32> to vector<16x1xf32>
    %cst_53 = arith.constant 3.200000e+01 : f32
    %132 = vector.broadcast %cst_53 : f32 to vector<16x1xf32>
    %133 = arith.divf %131, %132 : vector<16x1xf32>
    %134 = vector.broadcast %133 : vector<16x1xf32> to vector<16x32xf32>
    %135 = arith.subf %125, %134 : vector<16x32xf32>
    %136 = arith.mulf %135, %135 : vector<16x32xf32>
    %cst_54 = arith.constant dense<0.000000e+00> : vector<16xf32>
    %137 = vector.multi_reduction <add>, %136, %cst_54 [1] : vector<16x32xf32> to vector<16xf32>
    %138 = vector.shape_cast %137 : vector<16xf32> to vector<16x1xf32>
    %cst_55 = arith.constant 3.200000e+01 : f32
    %139 = vector.broadcast %cst_55 : f32 to vector<16x1xf32>
    %140 = arith.divf %138, %139 : vector<16x1xf32>
    %cst_56 = arith.constant 9.99999996E-13 : f32
    %141 = vector.broadcast %cst_56 : f32 to vector<16x1xf32>
    %142 = arith.addf %140, %141 : vector<16x1xf32>
    %143 = math.rsqrt %142 : vector<16x1xf32>
    %144 = vector.broadcast %143 : vector<16x1xf32> to vector<16x32xf32>
    %145 = arith.mulf %135, %144 : vector<16x32xf32>
    %146 = vector.broadcast %127 : vector<1x32xf32> to vector<16x32xf32>
    %147 = arith.mulf %145, %146 : vector<16x32xf32>
    %148 = vector.broadcast %129 : vector<1x32xf32> to vector<16x32xf32>
    %149 = arith.addf %147, %148 : vector<16x32xf32>
    %c0_57 = arith.constant 0 : index
    %c0_58 = arith.constant 0 : index
    %c0_59 = arith.constant 0 : index
    %150 = vector.load %arg9[%c0_57, %c0_58, %c0_59] : memref<2x32x64xf32, #tpu.memory_space<vmem>>, vector<1x32x64xf32>
    %151 = vector.shape_cast %150 : vector<1x32x64xf32> to vector<32x64xf32>
    %cst_60 = arith.constant dense<0.000000e+00> : vector<16x64xf32>
    %152 = tpu.matmul %149, %151, %cst_60 {dimension_numbers = #tpu.dot_dimension_numbers<[1], [0], [0], [1], [0, 0, 1, 1], [], []>} : vector<16x32xf32>, vector<32x64xf32>, vector<16x64xf32> -> vector<16x64xf32>
    %c0_61 = arith.constant 0 : index
    %c0_62 = arith.constant 0 : index
    %c0_63 = arith.constant 0 : index
    %153 = vector.load %arg10[%c0_61, %c0_62, %c0_63] : memref<2x1x64xf32, #tpu.memory_space<vmem>>, vector<1x1x64xf32>
    %154 = vector.shape_cast %153 : vector<1x1x64xf32> to vector<1x64xf32>
    %155 = vector.broadcast %154 : vector<1x64xf32> to vector<16x64xf32>
    %156 = arith.addf %152, %155 : vector<16x64xf32>
    %cst_64 = arith.constant 5.000000e-01 : f32
    %157 = vector.broadcast %cst_64 : f32 to vector<16x64xf32>
    %158 = arith.mulf %157, %156 : vector<16x64xf32>
    %cst_65 = arith.constant 4.471500e-02 : f32
    %159 = vector.broadcast %cst_65 : f32 to vector<16x64xf32>
    %160 = arith.mulf %159, %156 : vector<16x64xf32>
    %161 = arith.mulf %160, %156 : vector<16x64xf32>
    %162 = arith.mulf %161, %156 : vector<16x64xf32>
    %163 = arith.addf %156, %162 : vector<16x64xf32>
    %cst_66 = arith.constant 0.797884583 : f32
    %164 = vector.broadcast %cst_66 : f32 to vector<16x64xf32>
    %165 = arith.mulf %164, %163 : vector<16x64xf32>
    %166 = math.tanh %165 : vector<16x64xf32>
    %cst_67 = arith.constant 1.000000e+00 : f32
    %167 = vector.broadcast %cst_67 : f32 to vector<16x64xf32>
    %168 = arith.addf %167, %166 : vector<16x64xf32>
    %169 = arith.mulf %158, %168 : vector<16x64xf32>
    %c0_68 = arith.constant 0 : index
    %c0_69 = arith.constant 0 : index
    %c0_70 = arith.constant 0 : index
    %170 = vector.load %arg11[%c0_68, %c0_69, %c0_70] : memref<2x64x32xf32, #tpu.memory_space<vmem>>, vector<1x64x32xf32>
    %171 = vector.shape_cast %170 : vector<1x64x32xf32> to vector<64x32xf32>
    %cst_71 = arith.constant dense<0.000000e+00> : vector<16x32xf32>
    %172 = tpu.matmul %169, %171, %cst_71 {dimension_numbers = #tpu.dot_dimension_numbers<[1], [0], [0], [1], [0, 0, 1, 1], [], []>} : vector<16x64xf32>, vector<64x32xf32>, vector<16x32xf32> -> vector<16x32xf32>
    %c0_72 = arith.constant 0 : index
    %c0_73 = arith.constant 0 : index
    %c0_74 = arith.constant 0 : index
    %173 = vector.load %arg12[%c0_72, %c0_73, %c0_74] : memref<2x1x32xf32, #tpu.memory_space<vmem>>, vector<1x1x32xf32>
    %174 = vector.shape_cast %173 : vector<1x1x32xf32> to vector<1x32xf32>
    %175 = vector.broadcast %174 : vector<1x32xf32> to vector<16x32xf32>
    %176 = arith.addf %172, %175 : vector<16x32xf32>
    %177 = arith.addf %176, %149 : vector<16x32xf32>
    %c0_75 = arith.constant 0 : index
    %c0_76 = arith.constant 0 : index
    %c0_77 = arith.constant 0 : index
    %178 = vector.load %arg13[%c0_75, %c0_76, %c0_77] : memref<2x1x32xf32, #tpu.memory_space<vmem>>, vector<1x1x32xf32>
    %179 = vector.shape_cast %178 : vector<1x1x32xf32> to vector<1x32xf32>
    %c0_78 = arith.constant 0 : index
    %c0_79 = arith.constant 0 : index
    %c0_80 = arith.constant 0 : index
    %180 = vector.load %arg14[%c0_78, %c0_79, %c0_80] : memref<2x1x32xf32, #tpu.memory_space<vmem>>, vector<1x1x32xf32>
    %181 = vector.shape_cast %180 : vector<1x1x32xf32> to vector<1x32xf32>
    %cst_81 = arith.constant dense<0.000000e+00> : vector<16xf32>
    %182 = vector.multi_reduction <add>, %177, %cst_81 [1] : vector<16x32xf32> to vector<16xf32>
    %183 = vector.shape_cast %182 : vector<16xf32> to vector<16x1xf32>
    %cst_82 = arith.constant 3.200000e+01 : f32
    %184 = vector.broadcast %cst_82 : f32 to vector<16x1xf32>
    %185 = arith.divf %183, %184 : vector<16x1xf32>
    %186 = vector.broadcast %185 : vector<16x1xf32> to vector<16x32xf32>
    %187 = arith.subf %177, %186 : vector<16x32xf32>
    %188 = arith.mulf %187, %187 : vector<16x32xf32>
    %cst_83 = arith.constant dense<0.000000e+00> : vector<16xf32>
    %189 = vector.multi_reduction <add>, %188, %cst_83 [1] : vector<16x32xf32> to vector<16xf32>
    %190 = vector.shape_cast %189 : vector<16xf32> to vector<16x1xf32>
    %cst_84 = arith.constant 3.200000e+01 : f32
    %191 = vector.broadcast %cst_84 : f32 to vector<16x1xf32>
    %192 = arith.divf %190, %191 : vector<16x1xf32>
    %cst_85 = arith.constant 9.99999996E-13 : f32
    %193 = vector.broadcast %cst_85 : f32 to vector<16x1xf32>
    %194 = arith.addf %192, %193 : vector<16x1xf32>
    %195 = math.rsqrt %194 : vector<16x1xf32>
    %196 = vector.broadcast %195 : vector<16x1xf32> to vector<16x32xf32>
    %197 = arith.mulf %187, %196 : vector<16x32xf32>
    %198 = vector.broadcast %179 : vector<1x32xf32> to vector<16x32xf32>
    %199 = arith.mulf %197, %198 : vector<16x32xf32>
    %200 = vector.broadcast %181 : vector<1x32xf32> to vector<16x32xf32>
    %201 = arith.addf %199, %200 : vector<16x32xf32>
    %c1 = arith.constant 1 : index
    %c0_86 = arith.constant 0 : index
    %c0_87 = arith.constant 0 : index
    %202 = vector.load %arg3[%c1, %c0_86, %c0_87] : memref<2x32x96xf32, #tpu.memory_space<vmem>>, vector<1x32x96xf32>
    %203 = vector.shape_cast %202 : vector<1x32x96xf32> to vector<32x96xf32>
    %cst_88 = arith.constant dense<0.000000e+00> : vector<16x96xf32>
    %204 = tpu.matmul %201, %203, %cst_88 {dimension_numbers = #tpu.dot_dimension_numbers<[1], [0], [0], [1], [0, 0, 1, 1], [], []>} : vector<16x32xf32>, vector<32x96xf32>, vector<16x96xf32> -> vector<16x96xf32>
    %c1_89 = arith.constant 1 : index
    %c0_90 = arith.constant 0 : index
    %c0_91 = arith.constant 0 : index
    %205 = vector.load %arg4[%c1_89, %c0_90, %c0_91] : memref<2x1x96xf32, #tpu.memory_space<vmem>>, vector<1x1x96xf32>
    %206 = vector.shape_cast %205 : vector<1x1x96xf32> to vector<1x96xf32>
    %207 = vector.broadcast %206 : vector<1x96xf32> to vector<16x96xf32>
    %208 = arith.addf %204, %207 : vector<16x96xf32>
    %209 = vector.extract_strided_slice %208 {offsets = [0, 0], sizes = [16, 32], strides = [1, 1]} : vector<16x96xf32> to vector<16x32xf32>
    %210 = vector.shape_cast %209 : vector<16x32xf32> to vector<2x8x32xf32>
    %211 = vector.extract_strided_slice %208 {offsets = [0, 32], sizes = [16, 32], strides = [1, 1]} : vector<16x96xf32> to vector<16x32xf32>
    %212 = vector.shape_cast %211 : vector<16x32xf32> to vector<2x8x32xf32>
    %213 = vector.extract_strided_slice %208 {offsets = [0, 64], sizes = [16, 32], strides = [1, 1]} : vector<16x96xf32> to vector<16x32xf32>
    %214 = vector.shape_cast %213 : vector<16x32xf32> to vector<2x8x32xf32>
    %c1_92 = arith.constant 1 : index
    %c0_93 = arith.constant 0 : index
    %c0_94 = arith.constant 0 : index
    %215 = vector.load %arg5[%c1_92, %c0_93, %c0_94] : memref<2x32x32xf32, #tpu.memory_space<vmem>>, vector<1x32x32xf32>
    %216 = vector.shape_cast %215 : vector<1x32x32xf32> to vector<32x32xf32>
    %c1_95 = arith.constant 1 : index
    %c0_96 = arith.constant 0 : index
    %c0_97 = arith.constant 0 : index
    %217 = vector.load %arg6[%c1_95, %c0_96, %c0_97] : memref<2x1x32xf32, #tpu.memory_space<vmem>>, vector<1x1x32xf32>
    %218 = vector.shape_cast %217 : vector<1x1x32xf32> to vector<1x32xf32>
    %219 = vector.extract_strided_slice %210 {offsets = [0, 0, 0], sizes = [2, 8, 8], strides = [1, 1, 1]} : vector<2x8x32xf32> to vector<2x8x8xf32>
    %220 = vector.extract_strided_slice %212 {offsets = [0, 0, 0], sizes = [2, 8, 8], strides = [1, 1, 1]} : vector<2x8x32xf32> to vector<2x8x8xf32>
    %221 = vector.extract_strided_slice %214 {offsets = [0, 0, 0], sizes = [2, 8, 8], strides = [1, 1, 1]} : vector<2x8x32xf32> to vector<2x8x8xf32>
    "tpu.trace_start"() <{level = 10 : i32, message = "bqd,bkd->bqk"}> : () -> ()
    %cst_98 = arith.constant dense<0.000000e+00> : vector<2x8x8xf32>
    %222 = tpu.matmul %219, %220, %cst_98 {dimension_numbers = #tpu.dot_dimension_numbers<[2], [2], [1], [1], [0, 0, 0, 1, 1, 1], [0], [0]>} : vector<2x8x8xf32>, vector<2x8x8xf32>, vector<2x8x8xf32> -> vector<2x8x8xf32>
    "tpu.trace_stop"() : () -> ()
    %cst_99 = arith.constant 0.353553385 : f32
    %223 = vector.broadcast %cst_99 : f32 to vector<2x8x8xf32>
    %224 = arith.mulf %222, %223 : vector<2x8x8xf32>
    %cst_100 = arith.constant dense<0xFF800000> : vector<2x8xf32>
    %225 = vector.multi_reduction <maximumf>, %224, %cst_100 [2] : vector<2x8x8xf32> to vector<2x8xf32>
    %226 = vector.shape_cast %225 : vector<2x8xf32> to vector<2x8x1xf32>
    %227 = vector.broadcast %226 : vector<2x8x1xf32> to vector<2x8x8xf32>
    %228 = arith.subf %224, %227 : vector<2x8x8xf32>
    %229 = math.exp %228 : vector<2x8x8xf32>
    %cst_101 = arith.constant dense<0.000000e+00> : vector<2x8xf32>
    %230 = vector.multi_reduction <add>, %229, %cst_101 [2] : vector<2x8x8xf32> to vector<2x8xf32>
    %231 = vector.shape_cast %230 : vector<2x8xf32> to vector<2x8x1xf32>
    %232 = tpu.reciprocal %231 {approx = true} : vector<2x8x1xf32> -> vector<2x8x1xf32>
    %233 = vector.broadcast %232 : vector<2x8x1xf32> to vector<2x8x8xf32>
    %234 = arith.mulf %229, %233 : vector<2x8x8xf32>
    "tpu.trace_start"() <{level = 10 : i32, message = "bqk,bkd->bqd"}> : () -> ()
    %cst_102 = arith.constant dense<0.000000e+00> : vector<2x8x8xf32>
    %235 = tpu.matmul %234, %221, %cst_102 {dimension_numbers = #tpu.dot_dimension_numbers<[2], [1], [1], [2], [0, 0, 0, 1, 1, 2], [0], [0]>} : vector<2x8x8xf32>, vector<2x8x8xf32>, vector<2x8x8xf32> -> vector<2x8x8xf32>
    "tpu.trace_stop"() : () -> ()
    %236 = vector.shape_cast %235 : vector<2x8x8xf32> to vector<16x8xf32>
    %237 = vector.extract_strided_slice %216 {offsets = [0, 0], sizes = [8, 32], strides = [1, 1]} : vector<32x32xf32> to vector<8x32xf32>
    %cst_103 = arith.constant dense<0.000000e+00> : vector<16x32xf32>
    %238 = tpu.matmul %236, %237, %cst_103 {dimension_numbers = #tpu.dot_dimension_numbers<[1], [0], [0], [1], [0, 0, 1, 1], [], []>} : vector<16x8xf32>, vector<8x32xf32>, vector<16x32xf32> -> vector<16x32xf32>
    %239 = vector.broadcast %218 : vector<1x32xf32> to vector<16x32xf32>
    %240 = arith.addf %239, %238 : vector<16x32xf32>
    %241 = vector.extract_strided_slice %210 {offsets = [0, 0, 8], sizes = [2, 8, 8], strides = [1, 1, 1]} : vector<2x8x32xf32> to vector<2x8x8xf32>
    %242 = vector.extract_strided_slice %212 {offsets = [0, 0, 8], sizes = [2, 8, 8], strides = [1, 1, 1]} : vector<2x8x32xf32> to vector<2x8x8xf32>
    %243 = vector.extract_strided_slice %214 {offsets = [0, 0, 8], sizes = [2, 8, 8], strides = [1, 1, 1]} : vector<2x8x32xf32> to vector<2x8x8xf32>
    "tpu.trace_start"() <{level = 10 : i32, message = "bqd,bkd->bqk"}> : () -> ()
    %cst_104 = arith.constant dense<0.000000e+00> : vector<2x8x8xf32>
    %244 = tpu.matmul %241, %242, %cst_104 {dimension_numbers = #tpu.dot_dimension_numbers<[2], [2], [1], [1], [0, 0, 0, 1, 1, 1], [0], [0]>} : vector<2x8x8xf32>, vector<2x8x8xf32>, vector<2x8x8xf32> -> vector<2x8x8xf32>
    "tpu.trace_stop"() : () -> ()
    %cst_105 = arith.constant 0.353553385 : f32
    %245 = vector.broadcast %cst_105 : f32 to vector<2x8x8xf32>
    %246 = arith.mulf %244, %245 : vector<2x8x8xf32>
    %cst_106 = arith.constant dense<0xFF800000> : vector<2x8xf32>
    %247 = vector.multi_reduction <maximumf>, %246, %cst_106 [2] : vector<2x8x8xf32> to vector<2x8xf32>
    %248 = vector.shape_cast %247 : vector<2x8xf32> to vector<2x8x1xf32>
    %249 = vector.broadcast %248 : vector<2x8x1xf32> to vector<2x8x8xf32>
    %250 = arith.subf %246, %249 : vector<2x8x8xf32>
    %251 = math.exp %250 : vector<2x8x8xf32>
    %cst_107 = arith.constant dense<0.000000e+00> : vector<2x8xf32>
    %252 = vector.multi_reduction <add>, %251, %cst_107 [2] : vector<2x8x8xf32> to vector<2x8xf32>
    %253 = vector.shape_cast %252 : vector<2x8xf32> to vector<2x8x1xf32>
    %254 = tpu.reciprocal %253 {approx = true} : vector<2x8x1xf32> -> vector<2x8x1xf32>
    %255 = vector.broadcast %254 : vector<2x8x1xf32> to vector<2x8x8xf32>
    %256 = arith.mulf %251, %255 : vector<2x8x8xf32>
    "tpu.trace_start"() <{level = 10 : i32, message = "bqk,bkd->bqd"}> : () -> ()
    %cst_108 = arith.constant dense<0.000000e+00> : vector<2x8x8xf32>
    %257 = tpu.matmul %256, %243, %cst_108 {dimension_numbers = #tpu.dot_dimension_numbers<[2], [1], [1], [2], [0, 0, 0, 1, 1, 2], [0], [0]>} : vector<2x8x8xf32>, vector<2x8x8xf32>, vector<2x8x8xf32> -> vector<2x8x8xf32>
    "tpu.trace_stop"() : () -> ()
    %258 = vector.shape_cast %257 : vector<2x8x8xf32> to vector<16x8xf32>
    %259 = vector.extract_strided_slice %216 {offsets = [8, 0], sizes = [8, 32], strides = [1, 1]} : vector<32x32xf32> to vector<8x32xf32>
    %cst_109 = arith.constant dense<0.000000e+00> : vector<16x32xf32>
    %260 = tpu.matmul %258, %259, %cst_109 {dimension_numbers = #tpu.dot_dimension_numbers<[1], [0], [0], [1], [0, 0, 1, 1], [], []>} : vector<16x8xf32>, vector<8x32xf32>, vector<16x32xf32> -> vector<16x32xf32>
    %261 = arith.addf %240, %260 : vector<16x32xf32>
    %262 = vector.extract_strided_slice %210 {offsets = [0, 0, 16], sizes = [2, 8, 8], strides = [1, 1, 1]} : vector<2x8x32xf32> to vector<2x8x8xf32>
    %263 = vector.extract_strided_slice %212 {offsets = [0, 0, 16], sizes = [2, 8, 8], strides = [1, 1, 1]} : vector<2x8x32xf32> to vector<2x8x8xf32>
    %264 = vector.extract_strided_slice %214 {offsets = [0, 0, 16], sizes = [2, 8, 8], strides = [1, 1, 1]} : vector<2x8x32xf32> to vector<2x8x8xf32>
    "tpu.trace_start"() <{level = 10 : i32, message = "bqd,bkd->bqk"}> : () -> ()
    %cst_110 = arith.constant dense<0.000000e+00> : vector<2x8x8xf32>
    %265 = tpu.matmul %262, %263, %cst_110 {dimension_numbers = #tpu.dot_dimension_numbers<[2], [2], [1], [1], [0, 0, 0, 1, 1, 1], [0], [0]>} : vector<2x8x8xf32>, vector<2x8x8xf32>, vector<2x8x8xf32> -> vector<2x8x8xf32>
    "tpu.trace_stop"() : () -> ()
    %cst_111 = arith.constant 0.353553385 : f32
    %266 = vector.broadcast %cst_111 : f32 to vector<2x8x8xf32>
    %267 = arith.mulf %265, %266 : vector<2x8x8xf32>
    %cst_112 = arith.constant dense<0xFF800000> : vector<2x8xf32>
    %268 = vector.multi_reduction <maximumf>, %267, %cst_112 [2] : vector<2x8x8xf32> to vector<2x8xf32>
    %269 = vector.shape_cast %268 : vector<2x8xf32> to vector<2x8x1xf32>
    %270 = vector.broadcast %269 : vector<2x8x1xf32> to vector<2x8x8xf32>
    %271 = arith.subf %267, %270 : vector<2x8x8xf32>
    %272 = math.exp %271 : vector<2x8x8xf32>
    %cst_113 = arith.constant dense<0.000000e+00> : vector<2x8xf32>
    %273 = vector.multi_reduction <add>, %272, %cst_113 [2] : vector<2x8x8xf32> to vector<2x8xf32>
    %274 = vector.shape_cast %273 : vector<2x8xf32> to vector<2x8x1xf32>
    %275 = tpu.reciprocal %274 {approx = true} : vector<2x8x1xf32> -> vector<2x8x1xf32>
    %276 = vector.broadcast %275 : vector<2x8x1xf32> to vector<2x8x8xf32>
    %277 = arith.mulf %272, %276 : vector<2x8x8xf32>
    "tpu.trace_start"() <{level = 10 : i32, message = "bqk,bkd->bqd"}> : () -> ()
    %cst_114 = arith.constant dense<0.000000e+00> : vector<2x8x8xf32>
    %278 = tpu.matmul %277, %264, %cst_114 {dimension_numbers = #tpu.dot_dimension_numbers<[2], [1], [1], [2], [0, 0, 0, 1, 1, 2], [0], [0]>} : vector<2x8x8xf32>, vector<2x8x8xf32>, vector<2x8x8xf32> -> vector<2x8x8xf32>
    "tpu.trace_stop"() : () -> ()
    %279 = vector.shape_cast %278 : vector<2x8x8xf32> to vector<16x8xf32>
    %280 = vector.extract_strided_slice %216 {offsets = [16, 0], sizes = [8, 32], strides = [1, 1]} : vector<32x32xf32> to vector<8x32xf32>
    %cst_115 = arith.constant dense<0.000000e+00> : vector<16x32xf32>
    %281 = tpu.matmul %279, %280, %cst_115 {dimension_numbers = #tpu.dot_dimension_numbers<[1], [0], [0], [1], [0, 0, 1, 1], [], []>} : vector<16x8xf32>, vector<8x32xf32>, vector<16x32xf32> -> vector<16x32xf32>
    %282 = arith.addf %261, %281 : vector<16x32xf32>
    %283 = vector.extract_strided_slice %210 {offsets = [0, 0, 24], sizes = [2, 8, 8], strides = [1, 1, 1]} : vector<2x8x32xf32> to vector<2x8x8xf32>
    %284 = vector.extract_strided_slice %212 {offsets = [0, 0, 24], sizes = [2, 8, 8], strides = [1, 1, 1]} : vector<2x8x32xf32> to vector<2x8x8xf32>
    %285 = vector.extract_strided_slice %214 {offsets = [0, 0, 24], sizes = [2, 8, 8], strides = [1, 1, 1]} : vector<2x8x32xf32> to vector<2x8x8xf32>
    "tpu.trace_start"() <{level = 10 : i32, message = "bqd,bkd->bqk"}> : () -> ()
    %cst_116 = arith.constant dense<0.000000e+00> : vector<2x8x8xf32>
    %286 = tpu.matmul %283, %284, %cst_116 {dimension_numbers = #tpu.dot_dimension_numbers<[2], [2], [1], [1], [0, 0, 0, 1, 1, 1], [0], [0]>} : vector<2x8x8xf32>, vector<2x8x8xf32>, vector<2x8x8xf32> -> vector<2x8x8xf32>
    "tpu.trace_stop"() : () -> ()
    %cst_117 = arith.constant 0.353553385 : f32
    %287 = vector.broadcast %cst_117 : f32 to vector<2x8x8xf32>
    %288 = arith.mulf %286, %287 : vector<2x8x8xf32>
    %cst_118 = arith.constant dense<0xFF800000> : vector<2x8xf32>
    %289 = vector.multi_reduction <maximumf>, %288, %cst_118 [2] : vector<2x8x8xf32> to vector<2x8xf32>
    %290 = vector.shape_cast %289 : vector<2x8xf32> to vector<2x8x1xf32>
    %291 = vector.broadcast %290 : vector<2x8x1xf32> to vector<2x8x8xf32>
    %292 = arith.subf %288, %291 : vector<2x8x8xf32>
    %293 = math.exp %292 : vector<2x8x8xf32>
    %cst_119 = arith.constant dense<0.000000e+00> : vector<2x8xf32>
    %294 = vector.multi_reduction <add>, %293, %cst_119 [2] : vector<2x8x8xf32> to vector<2x8xf32>
    %295 = vector.shape_cast %294 : vector<2x8xf32> to vector<2x8x1xf32>
    %296 = tpu.reciprocal %295 {approx = true} : vector<2x8x1xf32> -> vector<2x8x1xf32>
    %297 = vector.broadcast %296 : vector<2x8x1xf32> to vector<2x8x8xf32>
    %298 = arith.mulf %293, %297 : vector<2x8x8xf32>
    "tpu.trace_start"() <{level = 10 : i32, message = "bqk,bkd->bqd"}> : () -> ()
    %cst_120 = arith.constant dense<0.000000e+00> : vector<2x8x8xf32>
    %299 = tpu.matmul %298, %285, %cst_120 {dimension_numbers = #tpu.dot_dimension_numbers<[2], [1], [1], [2], [0, 0, 0, 1, 1, 2], [0], [0]>} : vector<2x8x8xf32>, vector<2x8x8xf32>, vector<2x8x8xf32> -> vector<2x8x8xf32>
    "tpu.trace_stop"() : () -> ()
    %300 = vector.shape_cast %299 : vector<2x8x8xf32> to vector<16x8xf32>
    %301 = vector.extract_strided_slice %216 {offsets = [24, 0], sizes = [8, 32], strides = [1, 1]} : vector<32x32xf32> to vector<8x32xf32>
    %cst_121 = arith.constant dense<0.000000e+00> : vector<16x32xf32>
    %302 = tpu.matmul %300, %301, %cst_121 {dimension_numbers = #tpu.dot_dimension_numbers<[1], [0], [0], [1], [0, 0, 1, 1], [], []>} : vector<16x8xf32>, vector<8x32xf32>, vector<16x32xf32> -> vector<16x32xf32>
    %303 = arith.addf %282, %302 : vector<16x32xf32>
    %304 = arith.addf %303, %201 : vector<16x32xf32>
    %c1_122 = arith.constant 1 : index
    %c0_123 = arith.constant 0 : index
    %c0_124 = arith.constant 0 : index
    %305 = vector.load %arg7[%c1_122, %c0_123, %c0_124] : memref<2x1x32xf32, #tpu.memory_space<vmem>>, vector<1x1x32xf32>
    %306 = vector.shape_cast %305 : vector<1x1x32xf32> to vector<1x32xf32>
    %c1_125 = arith.constant 1 : index
    %c0_126 = arith.constant 0 : index
    %c0_127 = arith.constant 0 : index
    %307 = vector.load %arg8[%c1_125, %c0_126, %c0_127] : memref<2x1x32xf32, #tpu.memory_space<vmem>>, vector<1x1x32xf32>
    %308 = vector.shape_cast %307 : vector<1x1x32xf32> to vector<1x32xf32>
    %cst_128 = arith.constant dense<0.000000e+00> : vector<16xf32>
    %309 = vector.multi_reduction <add>, %304, %cst_128 [1] : vector<16x32xf32> to vector<16xf32>
    %310 = vector.shape_cast %309 : vector<16xf32> to vector<16x1xf32>
    %cst_129 = arith.constant 3.200000e+01 : f32
    %311 = vector.broadcast %cst_129 : f32 to vector<16x1xf32>
    %312 = arith.divf %310, %311 : vector<16x1xf32>
    %313 = vector.broadcast %312 : vector<16x1xf32> to vector<16x32xf32>
    %314 = arith.subf %304, %313 : vector<16x32xf32>
    %315 = arith.mulf %314, %314 : vector<16x32xf32>
    %cst_130 = arith.constant dense<0.000000e+00> : vector<16xf32>
    %316 = vector.multi_reduction <add>, %315, %cst_130 [1] : vector<16x32xf32> to vector<16xf32>
    %317 = vector.shape_cast %316 : vector<16xf32> to vector<16x1xf32>
    %cst_131 = arith.constant 3.200000e+01 : f32
    %318 = vector.broadcast %cst_131 : f32 to vector<16x1xf32>
    %319 = arith.divf %317, %318 : vector<16x1xf32>
    %cst_132 = arith.constant 9.99999996E-13 : f32
    %320 = vector.broadcast %cst_132 : f32 to vector<16x1xf32>
    %321 = arith.addf %319, %320 : vector<16x1xf32>
    %322 = math.rsqrt %321 : vector<16x1xf32>
    %323 = vector.broadcast %322 : vector<16x1xf32> to vector<16x32xf32>
    %324 = arith.mulf %314, %323 : vector<16x32xf32>
    %325 = vector.broadcast %306 : vector<1x32xf32> to vector<16x32xf32>
    %326 = arith.mulf %324, %325 : vector<16x32xf32>
    %327 = vector.broadcast %308 : vector<1x32xf32> to vector<16x32xf32>
    %328 = arith.addf %326, %327 : vector<16x32xf32>
    %c1_133 = arith.constant 1 : index
    %c0_134 = arith.constant 0 : index
    %c0_135 = arith.constant 0 : index
    %329 = vector.load %arg9[%c1_133, %c0_134, %c0_135] : memref<2x32x64xf32, #tpu.memory_space<vmem>>, vector<1x32x64xf32>
    %330 = vector.shape_cast %329 : vector<1x32x64xf32> to vector<32x64xf32>
    %cst_136 = arith.constant dense<0.000000e+00> : vector<16x64xf32>
    %331 = tpu.matmul %328, %330, %cst_136 {dimension_numbers = #tpu.dot_dimension_numbers<[1], [0], [0], [1], [0, 0, 1, 1], [], []>} : vector<16x32xf32>, vector<32x64xf32>, vector<16x64xf32> -> vector<16x64xf32>
    %c1_137 = arith.constant 1 : index
    %c0_138 = arith.constant 0 : index
    %c0_139 = arith.constant 0 : index
    %332 = vector.load %arg10[%c1_137, %c0_138, %c0_139] : memref<2x1x64xf32, #tpu.memory_space<vmem>>, vector<1x1x64xf32>
    %333 = vector.shape_cast %332 : vector<1x1x64xf32> to vector<1x64xf32>
    %334 = vector.broadcast %333 : vector<1x64xf32> to vector<16x64xf32>
    %335 = arith.addf %331, %334 : vector<16x64xf32>
    %cst_140 = arith.constant 5.000000e-01 : f32
    %336 = vector.broadcast %cst_140 : f32 to vector<16x64xf32>
    %337 = arith.mulf %336, %335 : vector<16x64xf32>
    %cst_141 = arith.constant 4.471500e-02 : f32
    %338 = vector.broadcast %cst_141 : f32 to vector<16x64xf32>
    %339 = arith.mulf %338, %335 : vector<16x64xf32>
    %340 = arith.mulf %339, %335 : vector<16x64xf32>
    %341 = arith.mulf %340, %335 : vector<16x64xf32>
    %342 = arith.addf %335, %341 : vector<16x64xf32>
    %cst_142 = arith.constant 0.797884583 : f32
    %343 = vector.broadcast %cst_142 : f32 to vector<16x64xf32>
    %344 = arith.mulf %343, %342 : vector<16x64xf32>
    %345 = math.tanh %344 : vector<16x64xf32>
    %cst_143 = arith.constant 1.000000e+00 : f32
    %346 = vector.broadcast %cst_143 : f32 to vector<16x64xf32>
    %347 = arith.addf %346, %345 : vector<16x64xf32>
    %348 = arith.mulf %337, %347 : vector<16x64xf32>
    %c1_144 = arith.constant 1 : index
    %c0_145 = arith.constant 0 : index
    %c0_146 = arith.constant 0 : index
    %349 = vector.load %arg11[%c1_144, %c0_145, %c0_146] : memref<2x64x32xf32, #tpu.memory_space<vmem>>, vector<1x64x32xf32>
    %350 = vector.shape_cast %349 : vector<1x64x32xf32> to vector<64x32xf32>
    %cst_147 = arith.constant dense<0.000000e+00> : vector<16x32xf32>
    %351 = tpu.matmul %348, %350, %cst_147 {dimension_numbers = #tpu.dot_dimension_numbers<[1], [0], [0], [1], [0, 0, 1, 1], [], []>} : vector<16x64xf32>, vector<64x32xf32>, vector<16x32xf32> -> vector<16x32xf32>
    %c1_148 = arith.constant 1 : index
    %c0_149 = arith.constant 0 : index
    %c0_150 = arith.constant 0 : index
    %352 = vector.load %arg12[%c1_148, %c0_149, %c0_150] : memref<2x1x32xf32, #tpu.memory_space<vmem>>, vector<1x1x32xf32>
    %353 = vector.shape_cast %352 : vector<1x1x32xf32> to vector<1x32xf32>
    %354 = vector.broadcast %353 : vector<1x32xf32> to vector<16x32xf32>
    %355 = arith.addf %351, %354 : vector<16x32xf32>
    %356 = arith.addf %355, %328 : vector<16x32xf32>
    %c1_151 = arith.constant 1 : index
    %c0_152 = arith.constant 0 : index
    %c0_153 = arith.constant 0 : index
    %357 = vector.load %arg13[%c1_151, %c0_152, %c0_153] : memref<2x1x32xf32, #tpu.memory_space<vmem>>, vector<1x1x32xf32>
    %358 = vector.shape_cast %357 : vector<1x1x32xf32> to vector<1x32xf32>
    %c1_154 = arith.constant 1 : index
    %c0_155 = arith.constant 0 : index
    %c0_156 = arith.constant 0 : index
    %359 = vector.load %arg14[%c1_154, %c0_155, %c0_156] : memref<2x1x32xf32, #tpu.memory_space<vmem>>, vector<1x1x32xf32>
    %360 = vector.shape_cast %359 : vector<1x1x32xf32> to vector<1x32xf32>
    %cst_157 = arith.constant dense<0.000000e+00> : vector<16xf32>
    %361 = vector.multi_reduction <add>, %356, %cst_157 [1] : vector<16x32xf32> to vector<16xf32>
    %362 = vector.shape_cast %361 : vector<16xf32> to vector<16x1xf32>
    %cst_158 = arith.constant 3.200000e+01 : f32
    %363 = vector.broadcast %cst_158 : f32 to vector<16x1xf32>
    %364 = arith.divf %362, %363 : vector<16x1xf32>
    %365 = vector.broadcast %364 : vector<16x1xf32> to vector<16x32xf32>
    %366 = arith.subf %356, %365 : vector<16x32xf32>
    %367 = arith.mulf %366, %366 : vector<16x32xf32>
    %cst_159 = arith.constant dense<0.000000e+00> : vector<16xf32>
    %368 = vector.multi_reduction <add>, %367, %cst_159 [1] : vector<16x32xf32> to vector<16xf32>
    %369 = vector.shape_cast %368 : vector<16xf32> to vector<16x1xf32>
    %cst_160 = arith.constant 3.200000e+01 : f32
    %370 = vector.broadcast %cst_160 : f32 to vector<16x1xf32>
    %371 = arith.divf %369, %370 : vector<16x1xf32>
    %cst_161 = arith.constant 9.99999996E-13 : f32
    %372 = vector.broadcast %cst_161 : f32 to vector<16x1xf32>
    %373 = arith.addf %371, %372 : vector<16x1xf32>
    %374 = math.rsqrt %373 : vector<16x1xf32>
    %375 = vector.broadcast %374 : vector<16x1xf32> to vector<16x32xf32>
    %376 = arith.mulf %366, %375 : vector<16x32xf32>
    %377 = vector.broadcast %358 : vector<1x32xf32> to vector<16x32xf32>
    %378 = arith.mulf %376, %377 : vector<16x32xf32>
    %379 = vector.broadcast %360 : vector<1x32xf32> to vector<16x32xf32>
    %380 = arith.addf %378, %379 : vector<16x32xf32>
    %381 = vector.shape_cast %380 : vector<16x32xf32> to vector<2x8x32xf32>
    %382 = vector.extract_strided_slice %381 {offsets = [0, 0, 0], sizes = [2, 1, 32], strides = [1, 1, 1]} : vector<2x8x32xf32> to vector<2x1x32xf32>
    %383 = vector.shape_cast %382 : vector<2x1x32xf32> to vector<2x32xf32>
    %c0_162 = arith.constant 0 : index
    %c0_163 = arith.constant 0 : index
    %384 = vector.load %arg15[%c0_162, %c0_163] : memref<32x32xf32, #tpu.memory_space<vmem>>, vector<32x32xf32>
    %cst_164 = arith.constant dense<0.000000e+00> : vector<2x32xf32>
    %385 = tpu.matmul %383, %384, %cst_164 {dimension_numbers = #tpu.dot_dimension_numbers<[1], [0], [0], [1], [0, 0, 1, 1], [], []>} : vector<2x32xf32>, vector<32x32xf32>, vector<2x32xf32> -> vector<2x32xf32>
    %c0_165 = arith.constant 0 : index
    %c0_166 = arith.constant 0 : index
    %386 = vector.load %arg16[%c0_165, %c0_166] : memref<1x32xf32, #tpu.memory_space<vmem>>, vector<1x32xf32>
    %387 = vector.broadcast %386 : vector<1x32xf32> to vector<2x32xf32>
    %388 = arith.addf %385, %387 : vector<2x32xf32>
    %389 = math.tanh %388 : vector<2x32xf32>
    %c0_167 = arith.constant 0 : index
    %c0_168 = arith.constant 0 : index
    %390 = vector.load %arg17[%c0_167, %c0_168] : memref<32x128xf32, #tpu.memory_space<vmem>>, vector<32x128xf32>
    %cst_169 = arith.constant dense<0.000000e+00> : vector<2x128xf32>
    %391 = tpu.matmul %389, %390, %cst_169 {dimension_numbers = #tpu.dot_dimension_numbers<[1], [0], [0], [1], [0, 0, 1, 1], [], []>} : vector<2x32xf32>, vector<32x128xf32>, vector<2x128xf32> -> vector<2x128xf32>
    %c0_170 = arith.constant 0 : index
    %c0_171 = arith.constant 0 : index
    %392 = vector.load %arg18[%c0_170, %c0_171] : memref<1x128xf32, #tpu.memory_space<vmem>>, vector<1x128xf32>
    %393 = vector.broadcast %392 : vector<1x128xf32> to vector<2x128xf32>
    %394 = arith.addf %391, %393 : vector<2x128xf32>
    %c0_172 = arith.constant 0 : index
    %c0_173 = arith.constant 0 : index
    %395 = vector.load %arg19[%c0_172, %c0_173] : memref<2x128xf32, #tpu.memory_space<vmem>>, vector<2x128xf32>
    tpu.vector_store %arg19[%c0_172, %c0_173], %394 {strides = array<i32>} : memref<2x128xf32, #tpu.memory_space<vmem>>, vector<2x128xf32>,
    return
  }
}

</mosaic_0001>

<llo_original>
// kernel: bert_classification_forward.1
$region0: #{bert_classification_forward.1}
  #allocation0 [shape = 'u32[]', space=smem, size = 0x4, offset = 0x4, fixed_abs, tag = 'smem constant byte address 0x4 - core index']
  #allocation1 [shape = 'u32[72,128]{1,0:T(1,128)}', space=vmem, size = 0x9000, scoped, tag = 'internal scratch']
  %s0 = inlined_call_operand.vmem [shape: f32[16,32], index: 0, kind: input, shape index: {}]
  %s1 = inlined_call_operand.vmem [shape: f32[1,32], index: 1, kind: input, shape index: {}]
  %s2 = inlined_call_operand.vmem [shape: f32[1,32], index: 2, kind: input, shape index: {}]
  %s3 = inlined_call_operand.vmem [shape: f32[2,32,96], index: 3, kind: input, shape index: {}]
  %s4 = inlined_call_operand.vmem [shape: f32[2,1,96], index: 4, kind: input, shape index: {}]
  %s5 = inlined_call_operand.vmem [shape: f32[2,32,32], index: 5, kind: input, shape index: {}]
  %s6 = inlined_call_operand.vmem [shape: f32[2,1,32], index: 6, kind: input, shape index: {}]
  %s7 = inlined_call_operand.vmem [shape: f32[2,1,32], index: 7, kind: input, shape index: {}]
  %s8 = inlined_call_operand.vmem [shape: f32[2,1,32], index: 8, kind: input, shape index: {}]
  %s9 = inlined_call_operand.vmem [shape: f32[2,32,64], index: 9, kind: input, shape index: {}]
  %s10 = inlined_call_operand.vmem [shape: f32[2,1,64], index: 10, kind: input, shape index: {}]
  %s11 = inlined_call_operand.vmem [shape: f32[2,64,32], index: 11, kind: input, shape index: {}]
  %s12 = inlined_call_operand.vmem [shape: f32[2,1,32], index: 12, kind: input, shape index: {}]
  %s13 = inlined_call_operand.vmem [shape: f32[2,1,32], index: 13, kind: input, shape index: {}]
  %s14 = inlined_call_operand.vmem [shape: f32[2,1,32], index: 14, kind: input, shape index: {}]
  %s15 = inlined_call_operand.vmem [shape: f32[32,32], index: 15, kind: input, shape index: {}]
  %s16 = inlined_call_operand.vmem [shape: f32[1,32], index: 16, kind: input, shape index: {}]
  %s17 = inlined_call_operand.vmem [shape: f32[32,128], index: 17, kind: input, shape index: {}]
  %s18 = inlined_call_operand.vmem [shape: f32[1,128], index: 18, kind: input, shape index: {}]
  %s19 = inlined_call_operand.hbm [shape: f32[2,128], index: 19, kind: output, shape index: {}]
  %s20 = sld [smem:[#allocation0]]
  $region86: #{bert_classification_forward.1} parent=0
    _
  %s22 = ssub.s32 1, %s20
  %s23 = scalar_select 0, %s22, %s20
  $region1: #{bert_classification_forward.1} parent=0
    #allocation2 [shape = 'u8[1024]{0}', space=vmem, size = 0x400, scoped, tag = 'output window, operand 0, single buffered']
    #allocation3 [shape = 's32[1]{0}', space=sflag, size = 0x4, scoped, tag = 'scoped memory for bert_classification_forward.1']
    %24 = vsyncpa [#allocation3], 0
    // Predicated region
    $region2: #{bert_classification_forward.1} parent=1 // pred_check
      _
    $region3: #{bert_classification_forward.1} parent=1 // pred_check_branch
      %26 = sbr.rel (0) target = $region5
    $region4: #{bert_classification_forward.1} parent=1 // pred_region
      _
    $region5: #{bert_classification_forward.1} parent=1 // pred_fallthru
      _
    // Predicated region
    $region6: #{bert_classification_forward.1} parent=1 // pred_check
      _
    $region7: #{bert_classification_forward.1} parent=1 // pred_check_branch
      %28 = sbr.rel (0) target = $region9
    $region8: #{bert_classification_forward.1} parent=1 // pred_region
      _
    $region9: #{bert_classification_forward.1} parent=1 // pred_fallthru
      _
    // Predicated region
    $region10: #{bert_classification_forward.1} parent=1 // pred_check
      _
    $region11: #{bert_classification_forward.1} parent=1 // pred_check_branch
      %30 = sbr.rel (0) target = $region13
    $region12: #{bert_classification_forward.1} parent=1 // pred_region
      _
    $region13: #{bert_classification_forward.1} parent=1 // pred_fallthru
      _
    // Predicated region
    $region14: #{bert_classification_forward.1} parent=1 // pred_check
      _
    $region15: #{bert_classification_forward.1} parent=1 // pred_check_branch
      %32 = sbr.rel (0) target = $region17
    $region16: #{bert_classification_forward.1} parent=1 // pred_region
      _
    $region17: #{bert_classification_forward.1} parent=1 // pred_fallthru
      _
    // Predicated region
    $region18: #{bert_classification_forward.1} parent=1 // pred_check
      _
    $region19: #{bert_classification_forward.1} parent=1 // pred_check_branch
      %34 = sbr.rel (0) target = $region21
    $region20: #{bert_classification_forward.1} parent=1 // pred_region
      _
    $region21: #{bert_classification_forward.1} parent=1 // pred_fallthru
      _
    // Predicated region
    $region22: #{bert_classification_forward.1} parent=1 // pred_check
      _
    $region23: #{bert_classification_forward.1} parent=1 // pred_check_branch
      %36 = sbr.rel (0) target = $region25
    $region24: #{bert_classification_forward.1} parent=1 // pred_region
      _
    $region25: #{bert_classification_forward.1} parent=1 // pred_fallthru
      _
    // Predicated region
    $region26: #{bert_classification_forward.1} parent=1 // pred_check
      _
    $region27: #{bert_classification_forward.1} parent=1 // pred_check_branch
      %38 = sbr.rel (0) target = $region29
    $region28: #{bert_classification_forward.1} parent=1 // pred_region
      _
    $region29: #{bert_classification_forward.1} parent=1 // pred_fallthru
      _
    // Predicated region
    $region30: #{bert_classification_forward.1} parent=1 // pred_check
      _
    $region31: #{bert_classification_forward.1} parent=1 // pred_check_branch
      %40 = sbr.rel (0) target = $region33
    $region32: #{bert_classification_forward.1} parent=1 // pred_region
      _
    $region33: #{bert_classification_forward.1} parent=1 // pred_fallthru
      _
    // Predicated region
    $region34: #{bert_classification_forward.1} parent=1 // pred_check
      _
    $region35: #{bert_classification_forward.1} parent=1 // pred_check_branch
      %42 = sbr.rel (0) target = $region37
    $region36: #{bert_classification_forward.1} parent=1 // pred_region
      _
    $region37: #{bert_classification_forward.1} parent=1 // pred_fallthru
      _
    // Predicated region
    $region38: #{bert_classification_forward.1} parent=1 // pred_check
      _
    $region39: #{bert_classification_forward.1} parent=1 // pred_check_branch
      %44 = sbr.rel (0) target = $region41
    $region40: #{bert_classification_forward.1} parent=1 // pred_region
      _
    $region41: #{bert_classification_forward.1} parent=1 // pred_fallthru
      _
    // Predicated region
    $region42: #{bert_classification_forward.1} parent=1 // pred_check
      _
    $region43: #{bert_classification_forward.1} parent=1 // pred_check_branch
      %46 = sbr.rel (0) target = $region45
    $region44: #{bert_classification_forward.1} parent=1 // pred_region
      _
    $region45: #{bert_classification_forward.1} parent=1 // pred_fallthru
      _
    // Predicated region
    $region46: #{bert_classification_forward.1} parent=1 // pred_check
      _
    $region47: #{bert_classification_forward.1} parent=1 // pred_check_branch
      %48 = sbr.rel (0) target = $region49
    $region48: #{bert_classification_forward.1} parent=1 // pred_region
      _
    $region49: #{bert_classification_forward.1} parent=1 // pred_fallthru
      _
    // Predicated region
    $region50: #{bert_classification_forward.1} parent=1 // pred_check
      _
    $region51: #{bert_classification_forward.1} parent=1 // pred_check_branch
      %50 = sbr.rel (0) target = $region53
    $region52: #{bert_classification_forward.1} parent=1 // pred_region
      _
    $region53: #{bert_classification_forward.1} parent=1 // pred_fallthru
      _
    // Predicated region
    $region54: #{bert_classification_forward.1} parent=1 // pred_check
      _
    $region55: #{bert_classification_forward.1} parent=1 // pred_check_branch
      %52 = sbr.rel (0) target = $region57
    $region56: #{bert_classification_forward.1} parent=1 // pred_region
      _
    $region57: #{bert_classification_forward.1} parent=1 // pred_fallthru
      _
    // Predicated region
    $region58: #{bert_classification_forward.1} parent=1 // pred_check
      _
    $region59: #{bert_classification_forward.1} parent=1 // pred_check_branch
      %54 = sbr.rel (0) target = $region61
    $region60: #{bert_classification_forward.1} parent=1 // pred_region
      _
    $region61: #{bert_classification_forward.1} parent=1 // pred_fallthru
      _
    // Predicated region
    $region62: #{bert_classification_forward.1} parent=1 // pred_check
      _
    $region63: #{bert_classification_forward.1} parent=1 // pred_check_branch
      %56 = sbr.rel (0) target = $region65
    $region64: #{bert_classification_forward.1} parent=1 // pred_region
      _
    $region65: #{bert_classification_forward.1} parent=1 // pred_fallthru
      _
    // Predicated region
    $region66: #{bert_classification_forward.1} parent=1 // pred_check
      _
    $region67: #{bert_classification_forward.1} parent=1 // pred_check_branch
      %58 = sbr.rel (0) target = $region69
    $region68: #{bert_classification_forward.1} parent=1 // pred_region
      _
    $region69: #{bert_classification_forward.1} parent=1 // pred_fallthru
      _
    // Predicated region
    $region70: #{bert_classification_forward.1} parent=1 // pred_check
      _
    $region71: #{bert_classification_forward.1} parent=1 // pred_check_branch
      %60 = sbr.rel (0) target = $region73
    $region72: #{bert_classification_forward.1} parent=1 // pred_region
      _
    $region73: #{bert_classification_forward.1} parent=1 // pred_fallthru
      _
    // Predicated region
    $region74: #{bert_classification_forward.1} parent=1 // pred_check
      _
    $region75: #{bert_classification_forward.1} parent=1 // pred_check_branch
      %62 = sbr.rel (0) target = $region77
    $region76: #{bert_classification_forward.1} parent=1 // pred_region
      _
    $region77: #{bert_classification_forward.1} parent=1 // pred_fallthru
      _
    %v63 = vld [vmem:[%s0] sm:$0xff]
    %v64 = vld [vmem:[%s0 + $0x8] sm:$0xff]
    %v65 = vld [vmem:[%s1] sm:$0x1]
    %v66 = vld [vmem:[%s2] sm:$0x1]
    %vm67 = vcmask 261120
    %v68 = vsel %vm67, %v63, 0.0
    %69 = vadd.xlane.f32.xlu0 %v68
    %v70 = vpop.xlane.xlu0 %69
    %v71 = vsel %vm67, %v64, 0.0
    %72 = vadd.xlane.f32.xlu0 %v71
    %v73 = vpop.xlane.xlu0 %72
    %v74 = vrcp.pop 32.0
    %v75 = vmul.f32 32.0, %v74
    %v76 = vsub.f32 1.0, %v75
    %v77 = vmul.f32 %v74, %v76
    %v78 = vadd.f32 %v74, %v77
    %vm79 = vweird.f32 %v74
    %v80 = vsel %vm79, %v74, %v78
    %v81 = vmul.f32 %v70, %v80
    %v82 = vmul.f32 %v73, %v80
    %v83 = vsub.f32 %v63, %v81
    %v84 = vsub.f32 %v64, %v82
    %v85 = vmul.f32 %v83, %v83
    %v86 = vmul.f32 %v84, %v84
    %v87 = vsel %vm67, %v85, 0.0
    %88 = vadd.xlane.f32.xlu0 %v87
    %v89 = vpop.xlane.xlu0 %88
    %v90 = vsel %vm67, %v86, 0.0
    %91 = vadd.xlane.f32.xlu0 %v90
    %v92 = vpop.xlane.xlu0 %91
    %v93 = vmul.f32 %v89, %v80
    %v94 = vmul.f32 %v92, %v80
    %v95 = vadd.f32 %v93, 1e-12
    %v96 = vadd.f32 %v94, 1e-12
    %v97 = vrsqrt.pop %v95
    %v98 = vmul.f32 %v97, %v95
    %v99 = vmul.f32 %v98, %v97
    %v100 = vmul.f32 0.5, %v99
    %v101 = vsub.f32 1.5, %v100
    %v102 = vmul.f32 %v97, %v101
    %vm103 = vweird.f32 %v95
    %vm104 = vweird.f32 %v97
    %vm105 = vmor %vm103, %vm104
    %v106 = vsel %vm105, %v97, %v102
    %v107 = vrsqrt.pop %v96
    %v108 = vmul.f32 %v107, %v96
    %v109 = vmul.f32 %v108, %v107
    %v110 = vmul.f32 0.5, %v109
    %v111 = vsub.f32 1.5, %v110
    %v112 = vmul.f32 %v107, %v111
    %vm113 = vweird.f32 %v96
    %vm114 = vweird.f32 %v107
    %vm115 = vmor %vm113, %vm114
    %v116 = vsel %vm115, %v107, %v112
    %v117 = vmul.f32 %v83, %v106
    %v118 = vmul.f32 %v84, %v116
    %v120 = vperm.slane %v65, 0
    %v122 = vmul.f32 %v117, %v120
    %v123 = vmul.f32 %v118, %v120
    %v125 = vperm.slane %v66, 0
    %v127 = vadd.f32 %v122, %v125
    %v128 = vadd.f32 %v123, %v125
    %v129 = vld [vmem:[%s3] sm:$0xff]
    %v130 = vld [vmem:[%s3 + $0x8] sm:$0xff]
    %v131 = vld [vmem:[%s3 + $0x10] sm:$0xff]
    %v132 = vld [vmem:[%s3 + $0x18] sm:$0xff]
    %v133 = vld [vmem:[%s4] sm:$0x1]
    %v135 = vperm.slane %v133, 0
    %v138 = vsel %vm67, %v127, 0
    %v141 = vsel %vm67, %v128, 0
    %143 = vmatpush.msra.mxu0 0.0
    %144 = vmatpush.msra.mxu0 0.0
    %145 = vmatpush.msra.mxu0 0.0
    %146 = vmatpush.msra.mxu0 0.0
    %147 = vmatpush.msra.mxu0 0.0
    %148 = vmatpush.msra.mxu0 0.0
    %149 = vmatpush.msra.mxu0 0.0
    %150 = vmatpush.msra.mxu0 0.0
    %151 = vmatpush.msra.mxu0 0.0
    %152 = vmatpush.msra.mxu0 0.0
    %153 = vmatpush.msra.mxu0 0.0
    %154 = vmatpush.msra.mxu0 0.0
    %155 = vmatpush.msra.mxu0 %v132
    %156 = vmatpush.msra.mxu0 %v131
    %157 = vmatpush.msra.mxu0 %v130
    %158 = vmatpush.msra.mxu0 %v129
    %159 = vmatmul.f32.gmra.mxu0 %v138
    %v160 = vpop.f32.mrf.mxu0
    %v161 = vadd.f32 %v135, %v160
    %162 = vmatmul.f32.gmra.mxu0 %v141
    %v163 = vpop.f32.mrf.mxu0
    %v164 = vadd.f32 %v135, %v163
    %165 = vdwg.mxu0
    %v166 = vld [vmem:[%s5] sm:$0xff]
    %v167 = vld [vmem:[%s5 + $0x8] sm:$0xff]
    %v168 = vld [vmem:[%s5 + $0x10] sm:$0xff]
    %v169 = vld [vmem:[%s5 + $0x18] sm:$0xff]
    %v170 = vld [vmem:[%s6] sm:$0x1]
    %172 = vrot.lane.b32.xlu0 %v161, 96
    %v173 = vpop.permute.xlu0 %172
    %vm174 = vcmask 64512
    %v175 = vsel %vm174, %v161, 0
    %v177 = vsel %vm174, %v173, 0
    %179 = vmatpush.xpose.msra.mxu0 0.0
    %180 = vmatpush.xpose.msra.mxu0 0.0
    %181 = vmatpush.xpose.msra.mxu0 0.0
    %182 = vmatpush.xpose.msra.mxu0 0.0
    %183 = vmatpush.xpose.msra.mxu0 0.0
    %184 = vmatpush.xpose.msra.mxu0 0.0
    %185 = vmatpush.xpose.msra.mxu0 0.0
    %186 = vmatpush.xpose.msra.mxu0 0.0
    %187 = vmatpush.xpose.msra.mxu0 0.0
    %188 = vmatpush.xpose.msra.mxu0 0.0
    %189 = vmatpush.xpose.msra.mxu0 0.0
    %190 = vmatpush.xpose.msra.mxu0 0.0
    %191 = vmatpush.xpose.msra.mxu0 0.0
    %192 = vmatpush.xpose.msra.mxu0 0.0
    %193 = vmatpush.xpose.msra.mxu0 0.0
    %194 = vmatpush.xpose.msra.mxu0 %v177
    %195 = vmatmul.f32.gmra.mxu0 %v175
    %v196 = vpop.f32.mrf.mxu0
    %v197 = vadd.f32 0.0, %v196
    %198 = vdwg.mxu0
    %200 = vrot.lane.b32.xlu0 %v164, 96
    %v201 = vpop.permute.xlu0 %200
    %v202 = vsel %vm174, %v164, 0
    %v204 = vsel %vm174, %v201, 0
    %206 = vmatpush.xpose.msra.mxu0 0.0
    %207 = vmatpush.xpose.msra.mxu0 0.0
    %208 = vmatpush.xpose.msra.mxu0 0.0
    %209 = vmatpush.xpose.msra.mxu0 0.0
    %210 = vmatpush.xpose.msra.mxu0 0.0
    %211 = vmatpush.xpose.msra.mxu0 0.0
    %212 = vmatpush.xpose.msra.mxu0 0.0
    %213 = vmatpush.xpose.msra.mxu0 0.0
    %214 = vmatpush.xpose.msra.mxu0 0.0
    %215 = vmatpush.xpose.msra.mxu0 0.0
    %216 = vmatpush.xpose.msra.mxu0 0.0
    %217 = vmatpush.xpose.msra.mxu0 0.0
    %218 = vmatpush.xpose.msra.mxu0 0.0
    %219 = vmatpush.xpose.msra.mxu0 0.0
    %220 = vmatpush.xpose.msra.mxu0 0.0
    %221 = vmatpush.xpose.msra.mxu0 %v204
    %222 = vmatmul.f32.gmra.mxu0 %v202
    %v223 = vpop.f32.mrf.mxu0
    %v224 = vadd.f32 0.0, %v223
    %225 = vdwg.mxu0
    %v226 = vmul.f32 %v197, 0.35355338
    %v227 = vmul.f32 %v224, 0.35355338
    %v228 = vsel %vm174, %v226, -inf
    %229 = vmax.xlane.f32.xlu0 %v228
    %v230 = vpop.xlane.xlu0 %229
    %v231 = vsel %vm174, %v227, -inf
    %232 = vmax.xlane.f32.xlu0 %v231
    %v233 = vpop.xlane.xlu0 %232
    %v234 = vsub.f32 %v226, %v230
    %v235 = vsub.f32 %v227, %v233
    %v236 = vmul.f32 %v234, 1.442695
    %v237 = vpow.pop %v236
    %v238 = vmul.f32 %v235, 1.442695
    %v239 = vpow.pop %v238
    %v240 = vsel %vm174, %v237, 0.0
    %241 = vadd.xlane.f32.xlu0 %v240
    %v242 = vpop.xlane.xlu0 %241
    %v243 = vsel %vm174, %v239, 0.0
    %244 = vadd.xlane.f32.xlu0 %v243
    %v245 = vpop.xlane.xlu0 %244
    %v246 = vrcp.pop %v242
    %v247 = vrcp.pop %v245
    %v248 = vmul.f32 %v237, %v246
    %v249 = vmul.f32 %v239, %v247
    %250 = vrot.lane.b32.xlu0 %v161, 64
    %v251 = vpop.permute.xlu0 %250
    %v254 = vsel %vm174, %v248, 0
    %256 = vmatpush.msra.mxu0 0.0
    %257 = vmatpush.msra.mxu0 0.0
    %258 = vmatpush.msra.mxu0 0.0
    %259 = vmatpush.msra.mxu0 0.0
    %260 = vmatpush.msra.mxu0 0.0
    %261 = vmatpush.msra.mxu0 0.0
    %262 = vmatpush.msra.mxu0 0.0
    %263 = vmatpush.msra.mxu0 0.0
    %264 = vmatpush.msra.mxu0 0.0
    %265 = vmatpush.msra.mxu0 0.0
    %266 = vmatpush.msra.mxu0 0.0
    %267 = vmatpush.msra.mxu0 0.0
    %268 = vmatpush.msra.mxu0 0.0
    %269 = vmatpush.msra.mxu0 0.0
    %270 = vmatpush.msra.mxu0 0.0
    %271 = vmatpush.msra.mxu0 %v251
    %272 = vmatmul.f32.gmra.mxu0 %v254
    %v273 = vpop.f32.mrf.mxu0
    %v274 = vadd.f32 0.0, %v273
    %275 = vdwg.mxu0
    %276 = vrot.lane.b32.xlu0 %v164, 64
    %v277 = vpop.permute.xlu0 %276
    %v280 = vsel %vm174, %v249, 0
    %282 = vmatpush.msra.mxu0 0.0
    %283 = vmatpush.msra.mxu0 0.0
    %284 = vmatpush.msra.mxu0 0.0
    %285 = vmatpush.msra.mxu0 0.0
    %286 = vmatpush.msra.mxu0 0.0
    %287 = vmatpush.msra.mxu0 0.0
    %288 = vmatpush.msra.mxu0 0.0
    %289 = vmatpush.msra.mxu0 0.0
    %290 = vmatpush.msra.mxu0 0.0
    %291 = vmatpush.msra.mxu0 0.0
    %292 = vmatpush.msra.mxu0 0.0
    %293 = vmatpush.msra.mxu0 0.0
    %294 = vmatpush.msra.mxu0 0.0
    %295 = vmatpush.msra.mxu0 0.0
    %296 = vmatpush.msra.mxu0 0.0
    %297 = vmatpush.msra.mxu0 %v277
    %298 = vmatmul.f32.gmra.mxu0 %v280
    %v299 = vpop.f32.mrf.mxu0
    %v300 = vadd.f32 0.0, %v299
    %301 = vdwg.mxu0
    %v303 = vsel %vm174, %v274, 0
    %v306 = vsel %vm174, %v300, 0
    %308 = vmatpush.msra.mxu0 0.0
    %309 = vmatpush.msra.mxu0 0.0
    %310 = vmatpush.msra.mxu0 0.0
    %311 = vmatpush.msra.mxu0 0.0
    %312 = vmatpush.msra.mxu0 0.0
    %313 = vmatpush.msra.mxu0 0.0
    %314 = vmatpush.msra.mxu0 0.0
    %315 = vmatpush.msra.mxu0 0.0
    %316 = vmatpush.msra.mxu0 0.0
    %317 = vmatpush.msra.mxu0 0.0
    %318 = vmatpush.msra.mxu0 0.0
    %319 = vmatpush.msra.mxu0 0.0
    %320 = vmatpush.msra.mxu0 0.0
    %321 = vmatpush.msra.mxu0 0.0
    %322 = vmatpush.msra.mxu0 0.0
    %323 = vmatpush.msra.mxu0 %v166
    %324 = vmatmul.f32.gmra.mxu0 %v303
    %v325 = vpop.f32.mrf.mxu0
    %v326 = vadd.f32 0.0, %v325
    %327 = vmatmul.f32.gmra.mxu0 %v306
    %v328 = vpop.f32.mrf.mxu0
    %v329 = vadd.f32 0.0, %v328
    %330 = vdwg.mxu0
    %v332 = vperm.slane %v170, 0
    %v334 = vadd.f32 %v332, %v326
    %v335 = vadd.f32 %v332, %v329
    %336 = vrot.lane.b32.xlu0 %v161, 120
    %v337 = vpop.permute.xlu0 %336
    %338 = vrot.lane.b32.xlu0 %v161, 88
    %v339 = vpop.permute.xlu0 %338
    %v340 = vsel %vm174, %v337, 0
    %v342 = vsel %vm174, %v339, 0
    %344 = vmatpush.xpose.msra.mxu0 0.0
    %345 = vmatpush.xpose.msra.mxu0 0.0
    %346 = vmatpush.xpose.msra.mxu0 0.0
    %347 = vmatpush.xpose.msra.mxu0 0.0
    %348 = vmatpush.xpose.msra.mxu0 0.0
    %349 = vmatpush.xpose.msra.mxu0 0.0
    %350 = vmatpush.xpose.msra.mxu0 0.0
    %351 = vmatpush.xpose.msra.mxu0 0.0
    %352 = vmatpush.xpose.msra.mxu0 0.0
    %353 = vmatpush.xpose.msra.mxu0 0.0
    %354 = vmatpush.xpose.msra.mxu0 0.0
    %355 = vmatpush.xpose.msra.mxu0 0.0
    %356 = vmatpush.xpose.msra.mxu0 0.0
    %357 = vmatpush.xpose.msra.mxu0 0.0
    %358 = vmatpush.xpose.msra.mxu0 0.0
    %359 = vmatpush.xpose.msra.mxu0 %v342
    %360 = vmatmul.f32.gmra.mxu0 %v340
    %v361 = vpop.f32.mrf.mxu0
    %v362 = vadd.f32 0.0, %v361
    %363 = vdwg.mxu0
    %364 = vrot.lane.b32.xlu0 %v164, 120
    %v365 = vpop.permute.xlu0 %364
    %366 = vrot.lane.b32.xlu0 %v164, 88
    %v367 = vpop.permute.xlu0 %366
    %v368 = vsel %vm174, %v365, 0
    %v370 = vsel %vm174, %v367, 0
    %372 = vmatpush.xpose.msra.mxu0 0.0
    %373 = vmatpush.xpose.msra.mxu0 0.0
    %374 = vmatpush.xpose.msra.mxu0 0.0
    %375 = vmatpush.xpose.msra.mxu0 0.0
    %376 = vmatpush.xpose.msra.mxu0 0.0
    %377 = vmatpush.xpose.msra.mxu0 0.0
    %378 = vmatpush.xpose.msra.mxu0 0.0
    %379 = vmatpush.xpose.msra.mxu0 0.0
    %380 = vmatpush.xpose.msra.mxu0 0.0
    %381 = vmatpush.xpose.msra.mxu0 0.0
    %382 = vmatpush.xpose.msra.mxu0 0.0
    %383 = vmatpush.xpose.msra.mxu0 0.0
    %384 = vmatpush.xpose.msra.mxu0 0.0
    %385 = vmatpush.xpose.msra.mxu0 0.0
    %386 = vmatpush.xpose.msra.mxu0 0.0
    %387 = vmatpush.xpose.msra.mxu0 %v370
    %388 = vmatmul.f32.gmra.mxu0 %v368
    %v389 = vpop.f32.mrf.mxu0
    %v390 = vadd.f32 0.0, %v389
    %391 = vdwg.mxu0
    %v392 = vmul.f32 %v362, 0.35355338
    %v393 = vmul.f32 %v390, 0.35355338
    %v394 = vsel %vm174, %v392, -inf
    %395 = vmax.xlane.f32.xlu0 %v394
    %v396 = vpop.xlane.xlu0 %395
    %v397 = vsel %vm174, %v393, -inf
    %398 = vmax.xlane.f32.xlu0 %v397
    %v399 = vpop.xlane.xlu0 %398
    %v400 = vsub.f32 %v392, %v396
    %v401 = vsub.f32 %v393, %v399
    %v402 = vmul.f32 %v400, 1.442695
    %v403 = vpow.pop %v402
    %v404 = vmul.f32 %v401, 1.442695
    %v405 = vpow.pop %v404
    %v406 = vsel %vm174, %v403, 0.0
    %407 = vadd.xlane.f32.xlu0 %v406
    %v408 = vpop.xlane.xlu0 %407
    %v409 = vsel %vm174, %v405, 0.0
    %410 = vadd.xlane.f32.xlu0 %v409
    %v411 = vpop.xlane.xlu0 %410
    %v412 = vrcp.pop %v408
    %v413 = vrcp.pop %v411
    %v414 = vmul.f32 %v403, %v412
    %v415 = vmul.f32 %v405, %v413
    %416 = vrot.lane.b32.xlu0 %v161, 56
    %v417 = vpop.permute.xlu0 %416
    %v420 = vsel %vm174, %v414, 0
    %422 = vmatpush.msra.mxu0 0.0
    %423 = vmatpush.msra.mxu0 0.0
    %424 = vmatpush.msra.mxu0 0.0
    %425 = vmatpush.msra.mxu0 0.0
    %426 = vmatpush.msra.mxu0 0.0
    %427 = vmatpush.msra.mxu0 0.0
    %428 = vmatpush.msra.mxu0 0.0
    %429 = vmatpush.msra.mxu0 0.0
    %430 = vmatpush.msra.mxu0 0.0
    %431 = vmatpush.msra.mxu0 0.0
    %432 = vmatpush.msra.mxu0 0.0
    %433 = vmatpush.msra.mxu0 0.0
    %434 = vmatpush.msra.mxu0 0.0
    %435 = vmatpush.msra.mxu0 0.0
    %436 = vmatpush.msra.mxu0 0.0
    %437 = vmatpush.msra.mxu0 %v417
    %438 = vmatmul.f32.gmra.mxu0 %v420
    %v439 = vpop.f32.mrf.mxu0
    %v440 = vadd.f32 0.0, %v439
    %441 = vdwg.mxu0
    %442 = vrot.lane.b32.xlu0 %v164, 56
    %v443 = vpop.permute.xlu0 %442
    %v446 = vsel %vm174, %v415, 0
    %448 = vmatpush.msra.mxu0 0.0
    %449 = vmatpush.msra.mxu0 0.0
    %450 = vmatpush.msra.mxu0 0.0
    %451 = vmatpush.msra.mxu0 0.0
    %452 = vmatpush.msra.mxu0 0.0
    %453 = vmatpush.msra.mxu0 0.0
    %454 = vmatpush.msra.mxu0 0.0
    %455 = vmatpush.msra.mxu0 0.0
    %456 = vmatpush.msra.mxu0 0.0
    %457 = vmatpush.msra.mxu0 0.0
    %458 = vmatpush.msra.mxu0 0.0
    %459 = vmatpush.msra.mxu0 0.0
    %460 = vmatpush.msra.mxu0 0.0
    %461 = vmatpush.msra.mxu0 0.0
    %462 = vmatpush.msra.mxu0 0.0
    %463 = vmatpush.msra.mxu0 %v443
    %464 = vmatmul.f32.gmra.mxu0 %v446
    %v465 = vpop.f32.mrf.mxu0
    %v466 = vadd.f32 0.0, %v465
    %467 = vdwg.mxu0
    %v469 = vsel %vm174, %v440, 0
    %v472 = vsel %vm174, %v466, 0
    %474 = vmatpush.msra.mxu0 0.0
    %475 = vmatpush.msra.mxu0 0.0
    %476 = vmatpush.msra.mxu0 0.0
    %477 = vmatpush.msra.mxu0 0.0
    %478 = vmatpush.msra.mxu0 0.0
    %479 = vmatpush.msra.mxu0 0.0
    %480 = vmatpush.msra.mxu0 0.0
    %481 = vmatpush.msra.mxu0 0.0
    %482 = vmatpush.msra.mxu0 0.0
    %483 = vmatpush.msra.mxu0 0.0
    %484 = vmatpush.msra.mxu0 0.0
    %485 = vmatpush.msra.mxu0 0.0
    %486 = vmatpush.msra.mxu0 0.0
    %487 = vmatpush.msra.mxu0 0.0
    %488 = vmatpush.msra.mxu0 0.0
    %489 = vmatpush.msra.mxu0 %v167
    %490 = vmatmul.f32.gmra.mxu0 %v469
    %v491 = vpop.f32.mrf.mxu0
    %v492 = vadd.f32 0.0, %v491
    %493 = vmatmul.f32.gmra.mxu0 %v472
    %v494 = vpop.f32.mrf.mxu0
    %v495 = vadd.f32 0.0, %v494
    %496 = vdwg.mxu0
    %v497 = vadd.f32 %v334, %v492
    %v498 = vadd.f32 %v335, %v495
    %499 = vrot.lane.b32.xlu0 %v161, 112
    %v500 = vpop.permute.xlu0 %499
    %501 = vrot.lane.b32.xlu0 %v161, 80
    %v502 = vpop.permute.xlu0 %501
    %v503 = vsel %vm174, %v500, 0
    %v505 = vsel %vm174, %v502, 0
    %507 = vmatpush.xpose.msra.mxu0 0.0
    %508 = vmatpush.xpose.msra.mxu0 0.0
    %509 = vmatpush.xpose.msra.mxu0 0.0
    %510 = vmatpush.xpose.msra.mxu0 0.0
    %511 = vmatpush.xpose.msra.mxu0 0.0
    %512 = vmatpush.xpose.msra.mxu0 0.0
    %513 = vmatpush.xpose.msra.mxu0 0.0
    %514 = vmatpush.xpose.msra.mxu0 0.0
    %515 = vmatpush.xpose.msra.mxu0 0.0
    %516 = vmatpush.xpose.msra.mxu0 0.0
    %517 = vmatpush.xpose.msra.mxu0 0.0
    %518 = vmatpush.xpose.msra.mxu0 0.0
    %519 = vmatpush.xpose.msra.mxu0 0.0
    %520 = vmatpush.xpose.msra.mxu0 0.0
    %521 = vmatpush.xpose.msra.mxu0 0.0
    %522 = vmatpush.xpose.msra.mxu0 %v505
    %523 = vmatmul.f32.gmra.mxu0 %v503
    %v524 = vpop.f32.mrf.mxu0
    %v525 = vadd.f32 0.0, %v524
    %526 = vdwg.mxu0
    %527 = vrot.lane.b32.xlu0 %v164, 112
    %v528 = vpop.permute.xlu0 %527
    %529 = vrot.lane.b32.xlu0 %v164, 80
    %v530 = vpop.permute.xlu0 %529
    %v531 = vsel %vm174, %v528, 0
    %v533 = vsel %vm174, %v530, 0
    %535 = vmatpush.xpose.msra.mxu0 0.0
    %536 = vmatpush.xpose.msra.mxu0 0.0
    %537 = vmatpush.xpose.msra.mxu0 0.0
    %538 = vmatpush.xpose.msra.mxu0 0.0
    %539 = vmatpush.xpose.msra.mxu0 0.0
    %540 = vmatpush.xpose.msra.mxu0 0.0
    %541 = vmatpush.xpose.msra.mxu0 0.0
    %542 = vmatpush.xpose.msra.mxu0 0.0
    %543 = vmatpush.xpose.msra.mxu0 0.0
    %544 = vmatpush.xpose.msra.mxu0 0.0
    %545 = vmatpush.xpose.msra.mxu0 0.0
    %546 = vmatpush.xpose.msra.mxu0 0.0
    %547 = vmatpush.xpose.msra.mxu0 0.0
    %548 = vmatpush.xpose.msra.mxu0 0.0
    %549 = vmatpush.xpose.msra.mxu0 0.0
    %550 = vmatpush.xpose.msra.mxu0 %v533
    %551 = vmatmul.f32.gmra.mxu0 %v531
    %v552 = vpop.f32.mrf.mxu0
    %v553 = vadd.f32 0.0, %v552
    %554 = vdwg.mxu0
    %v555 = vmul.f32 %v525, 0.35355338
    %v556 = vmul.f32 %v553, 0.35355338
    %v557 = vsel %vm174, %v555, -inf
    %558 = vmax.xlane.f32.xlu0 %v557
    %v559 = vpop.xlane.xlu0 %558
    %v560 = vsel %vm174, %v556, -inf
    %561 = vmax.xlane.f32.xlu0 %v560
    %v562 = vpop.xlane.xlu0 %561
    %v563 = vsub.f32 %v555, %v559
    %v564 = vsub.f32 %v556, %v562
    %v565 = vmul.f32 %v563, 1.442695
    %v566 = vpow.pop %v565
    %v567 = vmul.f32 %v564, 1.442695
    %v568 = vpow.pop %v567
    %v569 = vsel %vm174, %v566, 0.0
    %570 = vadd.xlane.f32.xlu0 %v569
    %v571 = vpop.xlane.xlu0 %570
    %v572 = vsel %vm174, %v568, 0.0
    %573 = vadd.xlane.f32.xlu0 %v572
    %v574 = vpop.xlane.xlu0 %573
    %v575 = vrcp.pop %v571
    %v576 = vrcp.pop %v574
    %v577 = vmul.f32 %v566, %v575
    %v578 = vmul.f32 %v568, %v576
    %579 = vrot.lane.b32.xlu0 %v161, 48
    %v580 = vpop.permute.xlu0 %579
    %v583 = vsel %vm174, %v577, 0
    %585 = vmatpush.msra.mxu0 0.0
    %586 = vmatpush.msra.mxu0 0.0
    %587 = vmatpush.msra.mxu0 0.0
    %588 = vmatpush.msra.mxu0 0.0
    %589 = vmatpush.msra.mxu0 0.0
    %590 = vmatpush.msra.mxu0 0.0
    %591 = vmatpush.msra.mxu0 0.0
    %592 = vmatpush.msra.mxu0 0.0
    %593 = vmatpush.msra.mxu0 0.0
    %594 = vmatpush.msra.mxu0 0.0
    %595 = vmatpush.msra.mxu0 0.0
    %596 = vmatpush.msra.mxu0 0.0
    %597 = vmatpush.msra.mxu0 0.0
    %598 = vmatpush.msra.mxu0 0.0
    %599 = vmatpush.msra.mxu0 0.0
    %600 = vmatpush.msra.mxu0 %v580
    %601 = vmatmul.f32.gmra.mxu0 %v583
    %v602 = vpop.f32.mrf.mxu0
    %v603 = vadd.f32 0.0, %v602
    %604 = vdwg.mxu0
    %605 = vrot.lane.b32.xlu0 %v164, 48
    %v606 = vpop.permute.xlu0 %605
    %v609 = vsel %vm174, %v578, 0
    %611 = vmatpush.msra.mxu0 0.0
    %612 = vmatpush.msra.mxu0 0.0
    %613 = vmatpush.msra.mxu0 0.0
    %614 = vmatpush.msra.mxu0 0.0
    %615 = vmatpush.msra.mxu0 0.0
    %616 = vmatpush.msra.mxu0 0.0
    %617 = vmatpush.msra.mxu0 0.0
    %618 = vmatpush.msra.mxu0 0.0
    %619 = vmatpush.msra.mxu0 0.0
    %620 = vmatpush.msra.mxu0 0.0
    %621 = vmatpush.msra.mxu0 0.0
    %622 = vmatpush.msra.mxu0 0.0
    %623 = vmatpush.msra.mxu0 0.0
    %624 = vmatpush.msra.mxu0 0.0
    %625 = vmatpush.msra.mxu0 0.0
    %626 = vmatpush.msra.mxu0 %v606
    %627 = vmatmul.f32.gmra.mxu0 %v609
    %v628 = vpop.f32.mrf.mxu0
    %v629 = vadd.f32 0.0, %v628
    %630 = vdwg.mxu0
    %v632 = vsel %vm174, %v603, 0
    %v635 = vsel %vm174, %v629, 0
    %637 = vmatpush.msra.mxu0 0.0
    %638 = vmatpush.msra.mxu0 0.0
    %639 = vmatpush.msra.mxu0 0.0
    %640 = vmatpush.msra.mxu0 0.0
    %641 = vmatpush.msra.mxu0 0.0
    %642 = vmatpush.msra.mxu0 0.0
    %643 = vmatpush.msra.mxu0 0.0
    %644 = vmatpush.msra.mxu0 0.0
    %645 = vmatpush.msra.mxu0 0.0
    %646 = vmatpush.msra.mxu0 0.0
    %647 = vmatpush.msra.mxu0 0.0
    %648 = vmatpush.msra.mxu0 0.0
    %649 = vmatpush.msra.mxu0 0.0
    %650 = vmatpush.msra.mxu0 0.0
    %651 = vmatpush.msra.mxu0 0.0
    %652 = vmatpush.msra.mxu0 %v168
    %653 = vmatmul.f32.gmra.mxu0 %v632
    %v654 = vpop.f32.mrf.mxu0
    %v655 = vadd.f32 0.0, %v654
    %656 = vmatmul.f32.gmra.mxu0 %v635
    %v657 = vpop.f32.mrf.mxu0
    %v658 = vadd.f32 0.0, %v657
    %659 = vdwg.mxu0
    %v660 = vadd.f32 %v497, %v655
    %v661 = vadd.f32 %v498, %v658
    %662 = vrot.lane.b32.xlu0 %v161, 104
    %v663 = vpop.permute.xlu0 %662
    %664 = vrot.lane.b32.xlu0 %v161, 72
    %v665 = vpop.permute.xlu0 %664
    %v666 = vsel %vm174, %v663, 0
    %v668 = vsel %vm174, %v665, 0
    %670 = vmatpush.xpose.msra.mxu0 0.0
    %671 = vmatpush.xpose.msra.mxu0 0.0
    %672 = vmatpush.xpose.msra.mxu0 0.0
    %673 = vmatpush.xpose.msra.mxu0 0.0
    %674 = vmatpush.xpose.msra.mxu0 0.0
    %675 = vmatpush.xpose.msra.mxu0 0.0
    %676 = vmatpush.xpose.msra.mxu0 0.0
    %677 = vmatpush.xpose.msra.mxu0 0.0
    %678 = vmatpush.xpose.msra.mxu0 0.0
    %679 = vmatpush.xpose.msra.mxu0 0.0
    %680 = vmatpush.xpose.msra.mxu0 0.0
    %681 = vmatpush.xpose.msra.mxu0 0.0
    %682 = vmatpush.xpose.msra.mxu0 0.0
    %683 = vmatpush.xpose.msra.mxu0 0.0
    %684 = vmatpush.xpose.msra.mxu0 0.0
    %685 = vmatpush.xpose.msra.mxu0 %v668
    %686 = vmatmul.f32.gmra.mxu0 %v666
    %v687 = vpop.f32.mrf.mxu0
    %v688 = vadd.f32 0.0, %v687
    %689 = vdwg.mxu0
    %690 = vrot.lane.b32.xlu0 %v164, 104
    %v691 = vpop.permute.xlu0 %690
    %692 = vrot.lane.b32.xlu0 %v164, 72
    %v693 = vpop.permute.xlu0 %692
    %v694 = vsel %vm174, %v691, 0
    %v696 = vsel %vm174, %v693, 0
    %698 = vmatpush.xpose.msra.mxu0 0.0
    %699 = vmatpush.xpose.msra.mxu0 0.0
    %700 = vmatpush.xpose.msra.mxu0 0.0
    %701 = vmatpush.xpose.msra.mxu0 0.0
    %702 = vmatpush.xpose.msra.mxu0 0.0
    %703 = vmatpush.xpose.msra.mxu0 0.0
    %704 = vmatpush.xpose.msra.mxu0 0.0
    %705 = vmatpush.xpose.msra.mxu0 0.0
    %706 = vmatpush.xpose.msra.mxu0 0.0
    %707 = vmatpush.xpose.msra.mxu0 0.0
    %708 = vmatpush.xpose.msra.mxu0 0.0
    %709 = vmatpush.xpose.msra.mxu0 0.0
    %710 = vmatpush.xpose.msra.mxu0 0.0
    %711 = vmatpush.xpose.msra.mxu0 0.0
    %712 = vmatpush.xpose.msra.mxu0 0.0
    %713 = vmatpush.xpose.msra.mxu0 %v696
    %714 = vmatmul.f32.gmra.mxu0 %v694
    %v715 = vpop.f32.mrf.mxu0
    %v716 = vadd.f32 0.0, %v715
    %717 = vdwg.mxu0
    %v718 = vmul.f32 %v688, 0.35355338
    %v719 = vmul.f32 %v716, 0.35355338
    %v720 = vsel %vm174, %v718, -inf
    %721 = vmax.xlane.f32.xlu0 %v720
    %v722 = vpop.xlane.xlu0 %721
    %v723 = vsel %vm174, %v719, -inf
    %724 = vmax.xlane.f32.xlu0 %v723
    %v725 = vpop.xlane.xlu0 %724
    %v726 = vsub.f32 %v718, %v722
    %v727 = vsub.f32 %v719, %v725
    %v728 = vmul.f32 %v726, 1.442695
    %v729 = vpow.pop %v728
    %v730 = vmul.f32 %v727, 1.442695
    %v731 = vpow.pop %v730
    %v732 = vsel %vm174, %v729, 0.0
    %733 = vadd.xlane.f32.xlu0 %v732
    %v734 = vpop.xlane.xlu0 %733
    %v735 = vsel %vm174, %v731, 0.0
    %736 = vadd.xlane.f32.xlu0 %v735
    %v737 = vpop.xlane.xlu0 %736
    %v738 = vrcp.pop %v734
    %v739 = vrcp.pop %v737
    %v740 = vmul.f32 %v729, %v738
    %v741 = vmul.f32 %v731, %v739
    %742 = vrot.lane.b32.xlu0 %v161, 40
    %v743 = vpop.permute.xlu0 %742
    %v746 = vsel %vm174, %v740, 0
    %748 = vmatpush.msra.mxu0 0.0
    %749 = vmatpush.msra.mxu0 0.0
    %750 = vmatpush.msra.mxu0 0.0
    %751 = vmatpush.msra.mxu0 0.0
    %752 = vmatpush.msra.mxu0 0.0
    %753 = vmatpush.msra.mxu0 0.0
    %754 = vmatpush.msra.mxu0 0.0
    %755 = vmatpush.msra.mxu0 0.0
    %756 = vmatpush.msra.mxu0 0.0
    %757 = vmatpush.msra.mxu0 0.0
    %758 = vmatpush.msra.mxu0 0.0
    %759 = vmatpush.msra.mxu0 0.0
    %760 = vmatpush.msra.mxu0 0.0
    %761 = vmatpush.msra.mxu0 0.0
    %762 = vmatpush.msra.mxu0 0.0
    %763 = vmatpush.msra.mxu0 %v743
    %764 = vmatmul.f32.gmra.mxu0 %v746
    %v765 = vpop.f32.mrf.mxu0
    %v766 = vadd.f32 0.0, %v765
    %767 = vdwg.mxu0
    %768 = vrot.lane.b32.xlu0 %v164, 40
    %v769 = vpop.permute.xlu0 %768
    %v772 = vsel %vm174, %v741, 0
    %774 = vmatpush.msra.mxu0 0.0
    %775 = vmatpush.msra.mxu0 0.0
    %776 = vmatpush.msra.mxu0 0.0
    %777 = vmatpush.msra.mxu0 0.0
    %778 = vmatpush.msra.mxu0 0.0
    %779 = vmatpush.msra.mxu0 0.0
    %780 = vmatpush.msra.mxu0 0.0
    %781 = vmatpush.msra.mxu0 0.0
    %782 = vmatpush.msra.mxu0 0.0
    %783 = vmatpush.msra.mxu0 0.0
    %784 = vmatpush.msra.mxu0 0.0
    %785 = vmatpush.msra.mxu0 0.0
    %786 = vmatpush.msra.mxu0 0.0
    %787 = vmatpush.msra.mxu0 0.0
    %788 = vmatpush.msra.mxu0 0.0
    %789 = vmatpush.msra.mxu0 %v769
    %790 = vmatmul.f32.gmra.mxu0 %v772
    %v791 = vpop.f32.mrf.mxu0
    %v792 = vadd.f32 0.0, %v791
    %793 = vdwg.mxu0
    %v795 = vsel %vm174, %v766, 0
    %v798 = vsel %vm174, %v792, 0
    %800 = vmatpush.msra.mxu0 0.0
    %801 = vmatpush.msra.mxu0 0.0
    %802 = vmatpush.msra.mxu0 0.0
    %803 = vmatpush.msra.mxu0 0.0
    %804 = vmatpush.msra.mxu0 0.0
    %805 = vmatpush.msra.mxu0 0.0
    %806 = vmatpush.msra.mxu0 0.0
    %807 = vmatpush.msra.mxu0 0.0
    %808 = vmatpush.msra.mxu0 0.0
    %809 = vmatpush.msra.mxu0 0.0
    %810 = vmatpush.msra.mxu0 0.0
    %811 = vmatpush.msra.mxu0 0.0
    %812 = vmatpush.msra.mxu0 0.0
    %813 = vmatpush.msra.mxu0 0.0
    %814 = vmatpush.msra.mxu0 0.0
    %815 = vmatpush.msra.mxu0 %v169
    %816 = vmatmul.f32.gmra.mxu0 %v795
    %v817 = vpop.f32.mrf.mxu0
    %v818 = vadd.f32 0.0, %v817
    %819 = vmatmul.f32.gmra.mxu0 %v798
    %v820 = vpop.f32.mrf.mxu0
    %v821 = vadd.f32 0.0, %v820
    %822 = vdwg.mxu0
    %v823 = vadd.f32 %v660, %v818
    %v824 = vadd.f32 %v661, %v821
    %v825 = vadd.f32 %v823, %v127
    %v826 = vadd.f32 %v824, %v128
    %v827 = vld [vmem:[%s7] sm:$0x1]
    %v828 = vld [vmem:[%s8] sm:$0x1]
    %v829 = vsel %vm67, %v825, 0.0
    %830 = vadd.xlane.f32.xlu0 %v829
    %v831 = vpop.xlane.xlu0 %830
    %v832 = vsel %vm67, %v826, 0.0
    %833 = vadd.xlane.f32.xlu0 %v832
    %v834 = vpop.xlane.xlu0 %833
    %v835 = vmul.f32 %v831, %v80
    %v836 = vmul.f32 %v834, %v80
    %v837 = vsub.f32 %v825, %v835
    %v838 = vsub.f32 %v826, %v836
    %v839 = vmul.f32 %v837, %v837
    %v840 = vmul.f32 %v838, %v838
    %v841 = vsel %vm67, %v839, 0.0
    %842 = vadd.xlane.f32.xlu0 %v841
    %v843 = vpop.xlane.xlu0 %842
    %v844 = vsel %vm67, %v840, 0.0
    %845 = vadd.xlane.f32.xlu0 %v844
    %v846 = vpop.xlane.xlu0 %845
    %v847 = vmul.f32 %v843, %v80
    %v848 = vmul.f32 %v846, %v80
    %v849 = vadd.f32 %v847, 1e-12
    %v850 = vadd.f32 %v848, 1e-12
    %v851 = vrsqrt.pop %v849
    %v852 = vmul.f32 %v851, %v849
    %v853 = vmul.f32 %v852, %v851
    %v854 = vmul.f32 0.5, %v853
    %v855 = vsub.f32 1.5, %v854
    %v856 = vmul.f32 %v851, %v855
    %vm857 = vweird.f32 %v849
    %vm858 = vweird.f32 %v851
    %vm859 = vmor %vm857, %vm858
    %v860 = vsel %vm859, %v851, %v856
    %v861 = vrsqrt.pop %v850
    %v862 = vmul.f32 %v861, %v850
    %v863 = vmul.f32 %v862, %v861
    %v864 = vmul.f32 0.5, %v863
    %v865 = vsub.f32 1.5, %v864
    %v866 = vmul.f32 %v861, %v865
    %vm867 = vweird.f32 %v850
    %vm868 = vweird.f32 %v861
    %vm869 = vmor %vm867, %vm868
    %v870 = vsel %vm869, %v861, %v866
    %v871 = vmul.f32 %v837, %v860
    %v872 = vmul.f32 %v838, %v870
    %v874 = vperm.slane %v827, 0
    %v876 = vmul.f32 %v871, %v874
    %v877 = vmul.f32 %v872, %v874
    %v879 = vperm.slane %v828, 0
    %v881 = vadd.f32 %v876, %v879
    %v882 = vadd.f32 %v877, %v879
    %v883 = vld [vmem:[%s9] sm:$0xff]
    %v884 = vld [vmem:[%s9 + $0x8] sm:$0xff]
    %v885 = vld [vmem:[%s9 + $0x10] sm:$0xff]
    %v886 = vld [vmem:[%s9 + $0x18] sm:$0xff]
    %v887 = vld [vmem:[%s10] sm:$0x1]
    %v889 = vperm.slane %v887, 0
    %v892 = vsel %vm67, %v881, 0
    %v895 = vsel %vm67, %v882, 0
    %897 = vmatpush.msra.mxu0 0.0
    %898 = vmatpush.msra.mxu0 0.0
    %899 = vmatpush.msra.mxu0 0.0
    %900 = vmatpush.msra.mxu0 0.0
    %901 = vmatpush.msra.mxu0 0.0
    %902 = vmatpush.msra.mxu0 0.0
    %903 = vmatpush.msra.mxu0 0.0
    %904 = vmatpush.msra.mxu0 0.0
    %905 = vmatpush.msra.mxu0 0.0
    %906 = vmatpush.msra.mxu0 0.0
    %907 = vmatpush.msra.mxu0 0.0
    %908 = vmatpush.msra.mxu0 0.0
    %909 = vmatpush.msra.mxu0 %v886
    %910 = vmatpush.msra.mxu0 %v885
    %911 = vmatpush.msra.mxu0 %v884
    %912 = vmatpush.msra.mxu0 %v883
    %913 = vmatmul.f32.gmra.mxu0 %v892
    %v914 = vpop.f32.mrf.mxu0
    %v915 = vadd.f32 %v889, %v914
    %916 = vmatmul.f32.gmra.mxu0 %v895
    %v917 = vpop.f32.mrf.mxu0
    %v918 = vadd.f32 %v889, %v917
    %919 = vdwg.mxu0
    %v920 = vmul.f32 %v915, 0.5
    %v921 = vmul.f32 %v918, 0.5
    %v922 = vmul.f32 %v915, 0.044715
    %v923 = vmul.f32 %v918, 0.044715
    %v924 = vmul.f32 %v922, %v915
    %v925 = vmul.f32 %v923, %v918
    %v926 = vmul.f32 %v924, %v915
    %v927 = vmul.f32 %v925, %v918
    %v928 = vadd.f32 %v915, %v926
    %v929 = vadd.f32 %v918, %v927
    %v930 = vmul.f32 %v928, 0.7978846
    %v931 = vmul.f32 %v929, 0.7978846
    %v932 = vtanh.pop %v930
    %v933 = vtanh.pop %v931
    %v934 = vadd.f32 %v932, 1.0
    %v935 = vadd.f32 %v933, 1.0
    %v936 = vmul.f32 %v920, %v934
    %v937 = vmul.f32 %v921, %v935
    %v938 = vld [vmem:[%s11] sm:$0xff]
    %v939 = vld [vmem:[%s11 + $0x8] sm:$0xff]
    %v940 = vld [vmem:[%s11 + $0x10] sm:$0xff]
    %v941 = vld [vmem:[%s11 + $0x18] sm:$0xff]
    %v942 = vld [vmem:[%s11 + $0x20] sm:$0xff]
    %v943 = vld [vmem:[%s11 + $0x28] sm:$0xff]
    %v944 = vld [vmem:[%s11 + $0x30] sm:$0xff]
    %v945 = vld [vmem:[%s11 + $0x38] sm:$0xff]
    %v946 = vld [vmem:[%s12] sm:$0x1]
    %v948 = vperm.slane %v946, 0
    %vm950 = vcmask 523264
    %v952 = vsel %vm950, %v936, 0
    %v955 = vsel %vm950, %v937, 0
    %957 = vmatpush.msra.mxu0 0.0
    %958 = vmatpush.msra.mxu0 0.0
    %959 = vmatpush.msra.mxu0 0.0
    %960 = vmatpush.msra.mxu0 0.0
    %961 = vmatpush.msra.mxu0 0.0
    %962 = vmatpush.msra.mxu0 0.0
    %963 = vmatpush.msra.mxu0 0.0
    %964 = vmatpush.msra.mxu0 0.0
    %965 = vmatpush.msra.mxu0 %v945
    %966 = vmatpush.msra.mxu0 %v944
    %967 = vmatpush.msra.mxu0 %v943
    %968 = vmatpush.msra.mxu0 %v942
    %969 = vmatpush.msra.mxu0 %v941
    %970 = vmatpush.msra.mxu0 %v940
    %971 = vmatpush.msra.mxu0 %v939
    %972 = vmatpush.msra.mxu0 %v938
    %973 = vmatmul.f32.gmra.mxu0 %v952
    %v974 = vpop.f32.mrf.mxu0
    %v975 = vadd.f32 %v948, %v974
    %976 = vmatmul.f32.gmra.mxu0 %v955
    %v977 = vpop.f32.mrf.mxu0
    %v978 = vadd.f32 %v948, %v977
    %979 = vdwg.mxu0
    %v980 = vadd.f32 %v975, %v881
    %v981 = vadd.f32 %v978, %v882
    %v982 = vld [vmem:[%s13] sm:$0x1]
    %v983 = vld [vmem:[%s14] sm:$0x1]
    %v984 = vsel %vm67, %v980, 0.0
    %985 = vadd.xlane.f32.xlu0 %v984
    %v986 = vpop.xlane.xlu0 %985
    %v987 = vsel %vm67, %v981, 0.0
    %988 = vadd.xlane.f32.xlu0 %v987
    %v989 = vpop.xlane.xlu0 %988
    %v990 = vmul.f32 %v986, %v80
    %v991 = vmul.f32 %v989, %v80
    %v992 = vsub.f32 %v980, %v990
    %v993 = vsub.f32 %v981, %v991
    %v994 = vmul.f32 %v992, %v992
    %v995 = vmul.f32 %v993, %v993
    %v996 = vsel %vm67, %v994, 0.0
    %997 = vadd.xlane.f32.xlu0 %v996
    %v998 = vpop.xlane.xlu0 %997
    %v999 = vsel %vm67, %v995, 0.0
    %1000 = vadd.xlane.f32.xlu0 %v999
    %v1001 = vpop.xlane.xlu0 %1000
    %v1002 = vmul.f32 %v998, %v80
    %v1003 = vmul.f32 %v1001, %v80
    %v1004 = vadd.f32 %v1002, 1e-12
    %v1005 = vadd.f32 %v1003, 1e-12
    %v1006 = vrsqrt.pop %v1004
    %v1007 = vmul.f32 %v1006, %v1004
    %v1008 = vmul.f32 %v1007, %v1006
    %v1009 = vmul.f32 0.5, %v1008
    %v1010 = vsub.f32 1.5, %v1009
    %v1011 = vmul.f32 %v1006, %v1010
    %vm1012 = vweird.f32 %v1004
    %vm1013 = vweird.f32 %v1006
    %vm1014 = vmor %vm1012, %vm1013
    %v1015 = vsel %vm1014, %v1006, %v1011
    %v1016 = vrsqrt.pop %v1005
    %v1017 = vmul.f32 %v1016, %v1005
    %v1018 = vmul.f32 %v1017, %v1016
    %v1019 = vmul.f32 0.5, %v1018
    %v1020 = vsub.f32 1.5, %v1019
    %v1021 = vmul.f32 %v1016, %v1020
    %vm1022 = vweird.f32 %v1005
    %vm1023 = vweird.f32 %v1016
    %vm1024 = vmor %vm1022, %vm1023
    %v1025 = vsel %vm1024, %v1016, %v1021
    %v1026 = vmul.f32 %v992, %v1015
    %v1027 = vmul.f32 %v993, %v1025
    %v1029 = vperm.slane %v982, 0
    %v1031 = vmul.f32 %v1026, %v1029
    %v1032 = vmul.f32 %v1027, %v1029
    %v1034 = vperm.slane %v983, 0
    %v1036 = vadd.f32 %v1031, %v1034
    %v1037 = vadd.f32 %v1032, %v1034
    %s1038 = scalar_lea.vmem %s3, 32
    %v1039 = vld [vmem:[%s1038] sm:$0xff]
    %v1040 = vld [vmem:[%s1038 + $0x8] sm:$0xff]
    %v1041 = vld [vmem:[%s1038 + $0x10] sm:$0xff]
    %v1042 = vld [vmem:[%s1038 + $0x18] sm:$0xff]
    %s1043 = scalar_lea.vmem %s4, 1
    %v1044 = vld [vmem:[%s1043] sm:$0x1]
    %v1046 = vperm.slane %v1044, 0
    %v1049 = vsel %vm67, %v1036, 0
    %v1052 = vsel %vm67, %v1037, 0
    %1054 = vmatpush.msra.mxu0 0.0
    %1055 = vmatpush.msra.mxu0 0.0
    %1056 = vmatpush.msra.mxu0 0.0
    %1057 = vmatpush.msra.mxu0 0.0
    %1058 = vmatpush.msra.mxu0 0.0
    %1059 = vmatpush.msra.mxu0 0.0
    %1060 = vmatpush.msra.mxu0 0.0
    %1061 = vmatpush.msra.mxu0 0.0
    %1062 = vmatpush.msra.mxu0 0.0
    %1063 = vmatpush.msra.mxu0 0.0
    %1064 = vmatpush.msra.mxu0 0.0
    %1065 = vmatpush.msra.mxu0 0.0
    %1066 = vmatpush.msra.mxu0 %v1042
    %1067 = vmatpush.msra.mxu0 %v1041
    %1068 = vmatpush.msra.mxu0 %v1040
    %1069 = vmatpush.msra.mxu0 %v1039
    %1070 = vmatmul.f32.gmra.mxu0 %v1049
    %v1071 = vpop.f32.mrf.mxu0
    %v1072 = vadd.f32 %v1046, %v1071
    %1073 = vmatmul.f32.gmra.mxu0 %v1052
    %v1074 = vpop.f32.mrf.mxu0
    %v1075 = vadd.f32 %v1046, %v1074
    %1076 = vdwg.mxu0
    %s1077 = scalar_lea.vmem %s5, 32
    %v1078 = vld [vmem:[%s1077] sm:$0xff]
    %v1079 = vld [vmem:[%s1077 + $0x8] sm:$0xff]
    %v1080 = vld [vmem:[%s1077 + $0x10] sm:$0xff]
    %v1081 = vld [vmem:[%s1077 + $0x18] sm:$0xff]
    %s1082 = scalar_lea.vmem %s6, 1
    %v1083 = vld [vmem:[%s1082] sm:$0x1]
    %1085 = vrot.lane.b32.xlu0 %v1072, 96
    %v1086 = vpop.permute.xlu0 %1085
    %v1087 = vsel %vm174, %v1072, 0
    %v1089 = vsel %vm174, %v1086, 0
    %1091 = vmatpush.xpose.msra.mxu0 0.0
    %1092 = vmatpush.xpose.msra.mxu0 0.0
    %1093 = vmatpush.xpose.msra.mxu0 0.0
    %1094 = vmatpush.xpose.msra.mxu0 0.0
    %1095 = vmatpush.xpose.msra.mxu0 0.0
    %1096 = vmatpush.xpose.msra.mxu0 0.0
    %1097 = vmatpush.xpose.msra.mxu0 0.0
    %1098 = vmatpush.xpose.msra.mxu0 0.0
    %1099 = vmatpush.xpose.msra.mxu0 0.0
    %1100 = vmatpush.xpose.msra.mxu0 0.0
    %1101 = vmatpush.xpose.msra.mxu0 0.0
    %1102 = vmatpush.xpose.msra.mxu0 0.0
    %1103 = vmatpush.xpose.msra.mxu0 0.0
    %1104 = vmatpush.xpose.msra.mxu0 0.0
    %1105 = vmatpush.xpose.msra.mxu0 0.0
    %1106 = vmatpush.xpose.msra.mxu0 %v1089
    %1107 = vmatmul.f32.gmra.mxu0 %v1087
    %v1108 = vpop.f32.mrf.mxu0
    %v1109 = vadd.f32 0.0, %v1108
    %1110 = vdwg.mxu0
    %1112 = vrot.lane.b32.xlu0 %v1075, 96
    %v1113 = vpop.permute.xlu0 %1112
    %v1114 = vsel %vm174, %v1075, 0
    %v1116 = vsel %vm174, %v1113, 0
    %1118 = vmatpush.xpose.msra.mxu0 0.0
    %1119 = vmatpush.xpose.msra.mxu0 0.0
    %1120 = vmatpush.xpose.msra.mxu0 0.0
    %1121 = vmatpush.xpose.msra.mxu0 0.0
    %1122 = vmatpush.xpose.msra.mxu0 0.0
    %1123 = vmatpush.xpose.msra.mxu0 0.0
    %1124 = vmatpush.xpose.msra.mxu0 0.0
    %1125 = vmatpush.xpose.msra.mxu0 0.0
    %1126 = vmatpush.xpose.msra.mxu0 0.0
    %1127 = vmatpush.xpose.msra.mxu0 0.0
    %1128 = vmatpush.xpose.msra.mxu0 0.0
    %1129 = vmatpush.xpose.msra.mxu0 0.0
    %1130 = vmatpush.xpose.msra.mxu0 0.0
    %1131 = vmatpush.xpose.msra.mxu0 0.0
    %1132 = vmatpush.xpose.msra.mxu0 0.0
    %1133 = vmatpush.xpose.msra.mxu0 %v1116
    %1134 = vmatmul.f32.gmra.mxu0 %v1114
    %v1135 = vpop.f32.mrf.mxu0
    %v1136 = vadd.f32 0.0, %v1135
    %1137 = vdwg.mxu0
    %v1138 = vmul.f32 %v1109, 0.35355338
    %v1139 = vmul.f32 %v1136, 0.35355338
    %v1140 = vsel %vm174, %v1138, -inf
    %1141 = vmax.xlane.f32.xlu0 %v1140
    %v1142 = vpop.xlane.xlu0 %1141
    %v1143 = vsel %vm174, %v1139, -inf
    %1144 = vmax.xlane.f32.xlu0 %v1143
    %v1145 = vpop.xlane.xlu0 %1144
    %v1146 = vsub.f32 %v1138, %v1142
    %v1147 = vsub.f32 %v1139, %v1145
    %v1148 = vmul.f32 %v1146, 1.442695
    %v1149 = vpow.pop %v1148
    %v1150 = vmul.f32 %v1147, 1.442695
    %v1151 = vpow.pop %v1150
    %v1152 = vsel %vm174, %v1149, 0.0
    %1153 = vadd.xlane.f32.xlu0 %v1152
    %v1154 = vpop.xlane.xlu0 %1153
    %v1155 = vsel %vm174, %v1151, 0.0
    %1156 = vadd.xlane.f32.xlu0 %v1155
    %v1157 = vpop.xlane.xlu0 %1156
    %v1158 = vrcp.pop %v1154
    %v1159 = vrcp.pop %v1157
    %v1160 = vmul.f32 %v1149, %v1158
    %v1161 = vmul.f32 %v1151, %v1159
    %1162 = vrot.lane.b32.xlu0 %v1072, 64
    %v1163 = vpop.permute.xlu0 %1162
    %v1166 = vsel %vm174, %v1160, 0
    %1168 = vmatpush.msra.mxu0 0.0
    %1169 = vmatpush.msra.mxu0 0.0
    %1170 = vmatpush.msra.mxu0 0.0
    %1171 = vmatpush.msra.mxu0 0.0
    %1172 = vmatpush.msra.mxu0 0.0
    %1173 = vmatpush.msra.mxu0 0.0
    %1174 = vmatpush.msra.mxu0 0.0
    %1175 = vmatpush.msra.mxu0 0.0
    %1176 = vmatpush.msra.mxu0 0.0
    %1177 = vmatpush.msra.mxu0 0.0
    %1178 = vmatpush.msra.mxu0 0.0
    %1179 = vmatpush.msra.mxu0 0.0
    %1180 = vmatpush.msra.mxu0 0.0
    %1181 = vmatpush.msra.mxu0 0.0
    %1182 = vmatpush.msra.mxu0 0.0
    %1183 = vmatpush.msra.mxu0 %v1163
    %1184 = vmatmul.f32.gmra.mxu0 %v1166
    %v1185 = vpop.f32.mrf.mxu0
    %v1186 = vadd.f32 0.0, %v1185
    %1187 = vdwg.mxu0
    %1188 = vrot.lane.b32.xlu0 %v1075, 64
    %v1189 = vpop.permute.xlu0 %1188
    %v1192 = vsel %vm174, %v1161, 0
    %1194 = vmatpush.msra.mxu0 0.0
    %1195 = vmatpush.msra.mxu0 0.0
    %1196 = vmatpush.msra.mxu0 0.0
    %1197 = vmatpush.msra.mxu0 0.0
    %1198 = vmatpush.msra.mxu0 0.0
    %1199 = vmatpush.msra.mxu0 0.0
    %1200 = vmatpush.msra.mxu0 0.0
    %1201 = vmatpush.msra.mxu0 0.0
    %1202 = vmatpush.msra.mxu0 0.0
    %1203 = vmatpush.msra.mxu0 0.0
    %1204 = vmatpush.msra.mxu0 0.0
    %1205 = vmatpush.msra.mxu0 0.0
    %1206 = vmatpush.msra.mxu0 0.0
    %1207 = vmatpush.msra.mxu0 0.0
    %1208 = vmatpush.msra.mxu0 0.0
    %1209 = vmatpush.msra.mxu0 %v1189
    %1210 = vmatmul.f32.gmra.mxu0 %v1192
    %v1211 = vpop.f32.mrf.mxu0
    %v1212 = vadd.f32 0.0, %v1211
    %1213 = vdwg.mxu0
    %v1215 = vsel %vm174, %v1186, 0
    %v1218 = vsel %vm174, %v1212, 0
    %1220 = vmatpush.msra.mxu0 0.0
    %1221 = vmatpush.msra.mxu0 0.0
    %1222 = vmatpush.msra.mxu0 0.0
    %1223 = vmatpush.msra.mxu0 0.0
    %1224 = vmatpush.msra.mxu0 0.0
    %1225 = vmatpush.msra.mxu0 0.0
    %1226 = vmatpush.msra.mxu0 0.0
    %1227 = vmatpush.msra.mxu0 0.0
    %1228 = vmatpush.msra.mxu0 0.0
    %1229 = vmatpush.msra.mxu0 0.0
    %1230 = vmatpush.msra.mxu0 0.0
    %1231 = vmatpush.msra.mxu0 0.0
    %1232 = vmatpush.msra.mxu0 0.0
    %1233 = vmatpush.msra.mxu0 0.0
    %1234 = vmatpush.msra.mxu0 0.0
    %1235 = vmatpush.msra.mxu0 %v1078
    %1236 = vmatmul.f32.gmra.mxu0 %v1215
    %v1237 = vpop.f32.mrf.mxu0
    %v1238 = vadd.f32 0.0, %v1237
    %1239 = vmatmul.f32.gmra.mxu0 %v1218
    %v1240 = vpop.f32.mrf.mxu0
    %v1241 = vadd.f32 0.0, %v1240
    %1242 = vdwg.mxu0
    %v1244 = vperm.slane %v1083, 0
    %v1246 = vadd.f32 %v1244, %v1238
    %v1247 = vadd.f32 %v1244, %v1241
    %1248 = vrot.lane.b32.xlu0 %v1072, 120
    %v1249 = vpop.permute.xlu0 %1248
    %1250 = vrot.lane.b32.xlu0 %v1072, 88
    %v1251 = vpop.permute.xlu0 %1250
    %v1252 = vsel %vm174, %v1249, 0
    %v1254 = vsel %vm174, %v1251, 0
    %1256 = vmatpush.xpose.msra.mxu0 0.0
    %1257 = vmatpush.xpose.msra.mxu0 0.0
    %1258 = vmatpush.xpose.msra.mxu0 0.0
    %1259 = vmatpush.xpose.msra.mxu0 0.0
    %1260 = vmatpush.xpose.msra.mxu0 0.0
    %1261 = vmatpush.xpose.msra.mxu0 0.0
    %1262 = vmatpush.xpose.msra.mxu0 0.0
    %1263 = vmatpush.xpose.msra.mxu0 0.0
    %1264 = vmatpush.xpose.msra.mxu0 0.0
    %1265 = vmatpush.xpose.msra.mxu0 0.0
    %1266 = vmatpush.xpose.msra.mxu0 0.0
    %1267 = vmatpush.xpose.msra.mxu0 0.0
    %1268 = vmatpush.xpose.msra.mxu0 0.0
    %1269 = vmatpush.xpose.msra.mxu0 0.0
    %1270 = vmatpush.xpose.msra.mxu0 0.0
    %1271 = vmatpush.xpose.msra.mxu0 %v1254
    %1272 = vmatmul.f32.gmra.mxu0 %v1252
    %v1273 = vpop.f32.mrf.mxu0
    %v1274 = vadd.f32 0.0, %v1273
    %1275 = vdwg.mxu0
    %1276 = vrot.lane.b32.xlu0 %v1075, 120
    %v1277 = vpop.permute.xlu0 %1276
    %1278 = vrot.lane.b32.xlu0 %v1075, 88
    %v1279 = vpop.permute.xlu0 %1278
    %v1280 = vsel %vm174, %v1277, 0
    %v1282 = vsel %vm174, %v1279, 0
    %1284 = vmatpush.xpose.msra.mxu0 0.0
    %1285 = vmatpush.xpose.msra.mxu0 0.0
    %1286 = vmatpush.xpose.msra.mxu0 0.0
    %1287 = vmatpush.xpose.msra.mxu0 0.0
    %1288 = vmatpush.xpose.msra.mxu0 0.0
    %1289 = vmatpush.xpose.msra.mxu0 0.0
    %1290 = vmatpush.xpose.msra.mxu0 0.0
    %1291 = vmatpush.xpose.msra.mxu0 0.0
    %1292 = vmatpush.xpose.msra.mxu0 0.0
    %1293 = vmatpush.xpose.msra.mxu0 0.0
    %1294 = vmatpush.xpose.msra.mxu0 0.0
    %1295 = vmatpush.xpose.msra.mxu0 0.0
    %1296 = vmatpush.xpose.msra.mxu0 0.0
    %1297 = vmatpush.xpose.msra.mxu0 0.0
    %1298 = vmatpush.xpose.msra.mxu0 0.0
    %1299 = vmatpush.xpose.msra.mxu0 %v1282
    %1300 = vmatmul.f32.gmra.mxu0 %v1280
    %v1301 = vpop.f32.mrf.mxu0
    %v1302 = vadd.f32 0.0, %v1301
    %1303 = vdwg.mxu0
    %v1304 = vmul.f32 %v1274, 0.35355338
    %v1305 = vmul.f32 %v1302, 0.35355338
    %v1306 = vsel %vm174, %v1304, -inf
    %1307 = vmax.xlane.f32.xlu0 %v1306
    %v1308 = vpop.xlane.xlu0 %1307
    %v1309 = vsel %vm174, %v1305, -inf
    %1310 = vmax.xlane.f32.xlu0 %v1309
    %v1311 = vpop.xlane.xlu0 %1310
    %v1312 = vsub.f32 %v1304, %v1308
    %v1313 = vsub.f32 %v1305, %v1311
    %v1314 = vmul.f32 %v1312, 1.442695
    %v1315 = vpow.pop %v1314
    %v1316 = vmul.f32 %v1313, 1.442695
    %v1317 = vpow.pop %v1316
    %v1318 = vsel %vm174, %v1315, 0.0
    %1319 = vadd.xlane.f32.xlu0 %v1318
    %v1320 = vpop.xlane.xlu0 %1319
    %v1321 = vsel %vm174, %v1317, 0.0
    %1322 = vadd.xlane.f32.xlu0 %v1321
    %v1323 = vpop.xlane.xlu0 %1322
    %v1324 = vrcp.pop %v1320
    %v1325 = vrcp.pop %v1323
    %v1326 = vmul.f32 %v1315, %v1324
    %v1327 = vmul.f32 %v1317, %v1325
    %1328 = vrot.lane.b32.xlu0 %v1072, 56
    %v1329 = vpop.permute.xlu0 %1328
    %v1332 = vsel %vm174, %v1326, 0
    %1334 = vmatpush.msra.mxu0 0.0
    %1335 = vmatpush.msra.mxu0 0.0
    %1336 = vmatpush.msra.mxu0 0.0
    %1337 = vmatpush.msra.mxu0 0.0
    %1338 = vmatpush.msra.mxu0 0.0
    %1339 = vmatpush.msra.mxu0 0.0
    %1340 = vmatpush.msra.mxu0 0.0
    %1341 = vmatpush.msra.mxu0 0.0
    %1342 = vmatpush.msra.mxu0 0.0
    %1343 = vmatpush.msra.mxu0 0.0
    %1344 = vmatpush.msra.mxu0 0.0
    %1345 = vmatpush.msra.mxu0 0.0
    %1346 = vmatpush.msra.mxu0 0.0
    %1347 = vmatpush.msra.mxu0 0.0
    %1348 = vmatpush.msra.mxu0 0.0
    %1349 = vmatpush.msra.mxu0 %v1329
    %1350 = vmatmul.f32.gmra.mxu0 %v1332
    %v1351 = vpop.f32.mrf.mxu0
    %v1352 = vadd.f32 0.0, %v1351
    %1353 = vdwg.mxu0
    %1354 = vrot.lane.b32.xlu0 %v1075, 56
    %v1355 = vpop.permute.xlu0 %1354
    %v1358 = vsel %vm174, %v1327, 0
    %1360 = vmatpush.msra.mxu0 0.0
    %1361 = vmatpush.msra.mxu0 0.0
    %1362 = vmatpush.msra.mxu0 0.0
    %1363 = vmatpush.msra.mxu0 0.0
    %1364 = vmatpush.msra.mxu0 0.0
    %1365 = vmatpush.msra.mxu0 0.0
    %1366 = vmatpush.msra.mxu0 0.0
    %1367 = vmatpush.msra.mxu0 0.0
    %1368 = vmatpush.msra.mxu0 0.0
    %1369 = vmatpush.msra.mxu0 0.0
    %1370 = vmatpush.msra.mxu0 0.0
    %1371 = vmatpush.msra.mxu0 0.0
    %1372 = vmatpush.msra.mxu0 0.0
    %1373 = vmatpush.msra.mxu0 0.0
    %1374 = vmatpush.msra.mxu0 0.0
    %1375 = vmatpush.msra.mxu0 %v1355
    %1376 = vmatmul.f32.gmra.mxu0 %v1358
    %v1377 = vpop.f32.mrf.mxu0
    %v1378 = vadd.f32 0.0, %v1377
    %1379 = vdwg.mxu0
    %v1381 = vsel %vm174, %v1352, 0
    %v1384 = vsel %vm174, %v1378, 0
    %1386 = vmatpush.msra.mxu0 0.0
    %1387 = vmatpush.msra.mxu0 0.0
    %1388 = vmatpush.msra.mxu0 0.0
    %1389 = vmatpush.msra.mxu0 0.0
    %1390 = vmatpush.msra.mxu0 0.0
    %1391 = vmatpush.msra.mxu0 0.0
    %1392 = vmatpush.msra.mxu0 0.0
    %1393 = vmatpush.msra.mxu0 0.0
    %1394 = vmatpush.msra.mxu0 0.0
    %1395 = vmatpush.msra.mxu0 0.0
    %1396 = vmatpush.msra.mxu0 0.0
    %1397 = vmatpush.msra.mxu0 0.0
    %1398 = vmatpush.msra.mxu0 0.0
    %1399 = vmatpush.msra.mxu0 0.0
    %1400 = vmatpush.msra.mxu0 0.0
    %1401 = vmatpush.msra.mxu0 %v1079
    %1402 = vmatmul.f32.gmra.mxu0 %v1381
    %v1403 = vpop.f32.mrf.mxu0
    %v1404 = vadd.f32 0.0, %v1403
    %1405 = vmatmul.f32.gmra.mxu0 %v1384
    %v1406 = vpop.f32.mrf.mxu0
    %v1407 = vadd.f32 0.0, %v1406
    %1408 = vdwg.mxu0
    %v1409 = vadd.f32 %v1246, %v1404
    %v1410 = vadd.f32 %v1247, %v1407
    %1411 = vrot.lane.b32.xlu0 %v1072, 112
    %v1412 = vpop.permute.xlu0 %1411
    %1413 = vrot.lane.b32.xlu0 %v1072, 80
    %v1414 = vpop.permute.xlu0 %1413
    %v1415 = vsel %vm174, %v1412, 0
    %v1417 = vsel %vm174, %v1414, 0
    %1419 = vmatpush.xpose.msra.mxu0 0.0
    %1420 = vmatpush.xpose.msra.mxu0 0.0
    %1421 = vmatpush.xpose.msra.mxu0 0.0
    %1422 = vmatpush.xpose.msra.mxu0 0.0
    %1423 = vmatpush.xpose.msra.mxu0 0.0
    %1424 = vmatpush.xpose.msra.mxu0 0.0
    %1425 = vmatpush.xpose.msra.mxu0 0.0
    %1426 = vmatpush.xpose.msra.mxu0 0.0
    %1427 = vmatpush.xpose.msra.mxu0 0.0
    %1428 = vmatpush.xpose.msra.mxu0 0.0
    %1429 = vmatpush.xpose.msra.mxu0 0.0
    %1430 = vmatpush.xpose.msra.mxu0 0.0
    %1431 = vmatpush.xpose.msra.mxu0 0.0
    %1432 = vmatpush.xpose.msra.mxu0 0.0
    %1433 = vmatpush.xpose.msra.mxu0 0.0
    %1434 = vmatpush.xpose.msra.mxu0 %v1417
    %1435 = vmatmul.f32.gmra.mxu0 %v1415
    %v1436 = vpop.f32.mrf.mxu0
    %v1437 = vadd.f32 0.0, %v1436
    %1438 = vdwg.mxu0
    %1439 = vrot.lane.b32.xlu0 %v1075, 112
    %v1440 = vpop.permute.xlu0 %1439
    %1441 = vrot.lane.b32.xlu0 %v1075, 80
    %v1442 = vpop.permute.xlu0 %1441
    %v1443 = vsel %vm174, %v1440, 0
    %v1445 = vsel %vm174, %v1442, 0
    %1447 = vmatpush.xpose.msra.mxu0 0.0
    %1448 = vmatpush.xpose.msra.mxu0 0.0
    %1449 = vmatpush.xpose.msra.mxu0 0.0
    %1450 = vmatpush.xpose.msra.mxu0 0.0
    %1451 = vmatpush.xpose.msra.mxu0 0.0
    %1452 = vmatpush.xpose.msra.mxu0 0.0
    %1453 = vmatpush.xpose.msra.mxu0 0.0
    %1454 = vmatpush.xpose.msra.mxu0 0.0
    %1455 = vmatpush.xpose.msra.mxu0 0.0
    %1456 = vmatpush.xpose.msra.mxu0 0.0
    %1457 = vmatpush.xpose.msra.mxu0 0.0
    %1458 = vmatpush.xpose.msra.mxu0 0.0
    %1459 = vmatpush.xpose.msra.mxu0 0.0
    %1460 = vmatpush.xpose.msra.mxu0 0.0
    %1461 = vmatpush.xpose.msra.mxu0 0.0
    %1462 = vmatpush.xpose.msra.mxu0 %v1445
    %1463 = vmatmul.f32.gmra.mxu0 %v1443
    %v1464 = vpop.f32.mrf.mxu0
    %v1465 = vadd.f32 0.0, %v1464
    %1466 = vdwg.mxu0
    %v1467 = vmul.f32 %v1437, 0.35355338
    %v1468 = vmul.f32 %v1465, 0.35355338
    %v1469 = vsel %vm174, %v1467, -inf
    %1470 = vmax.xlane.f32.xlu0 %v1469
    %v1471 = vpop.xlane.xlu0 %1470
    %v1472 = vsel %vm174, %v1468, -inf
    %1473 = vmax.xlane.f32.xlu0 %v1472
    %v1474 = vpop.xlane.xlu0 %1473
    %v1475 = vsub.f32 %v1467, %v1471
    %v1476 = vsub.f32 %v1468, %v1474
    %v1477 = vmul.f32 %v1475, 1.442695
    %v1478 = vpow.pop %v1477
    %v1479 = vmul.f32 %v1476, 1.442695
    %v1480 = vpow.pop %v1479
    %v1481 = vsel %vm174, %v1478, 0.0
    %1482 = vadd.xlane.f32.xlu0 %v1481
    %v1483 = vpop.xlane.xlu0 %1482
    %v1484 = vsel %vm174, %v1480, 0.0
    %1485 = vadd.xlane.f32.xlu0 %v1484
    %v1486 = vpop.xlane.xlu0 %1485
    %v1487 = vrcp.pop %v1483
    %v1488 = vrcp.pop %v1486
    %v1489 = vmul.f32 %v1478, %v1487
    %v1490 = vmul.f32 %v1480, %v1488
    %1491 = vrot.lane.b32.xlu0 %v1072, 48
    %v1492 = vpop.permute.xlu0 %1491
    %v1495 = vsel %vm174, %v1489, 0
    %1497 = vmatpush.msra.mxu0 0.0
    %1498 = vmatpush.msra.mxu0 0.0
    %1499 = vmatpush.msra.mxu0 0.0
    %1500 = vmatpush.msra.mxu0 0.0
    %1501 = vmatpush.msra.mxu0 0.0
    %1502 = vmatpush.msra.mxu0 0.0
    %1503 = vmatpush.msra.mxu0 0.0
    %1504 = vmatpush.msra.mxu0 0.0
    %1505 = vmatpush.msra.mxu0 0.0
    %1506 = vmatpush.msra.mxu0 0.0
    %1507 = vmatpush.msra.mxu0 0.0
    %1508 = vmatpush.msra.mxu0 0.0
    %1509 = vmatpush.msra.mxu0 0.0
    %1510 = vmatpush.msra.mxu0 0.0
    %1511 = vmatpush.msra.mxu0 0.0
    %1512 = vmatpush.msra.mxu0 %v1492
    %1513 = vmatmul.f32.gmra.mxu0 %v1495
    %v1514 = vpop.f32.mrf.mxu0
    %v1515 = vadd.f32 0.0, %v1514
    %1516 = vdwg.mxu0
    %1517 = vrot.lane.b32.xlu0 %v1075, 48
    %v1518 = vpop.permute.xlu0 %1517
    %v1521 = vsel %vm174, %v1490, 0
    %1523 = vmatpush.msra.mxu0 0.0
    %1524 = vmatpush.msra.mxu0 0.0
    %1525 = vmatpush.msra.mxu0 0.0
    %1526 = vmatpush.msra.mxu0 0.0
    %1527 = vmatpush.msra.mxu0 0.0
    %1528 = vmatpush.msra.mxu0 0.0
    %1529 = vmatpush.msra.mxu0 0.0
    %1530 = vmatpush.msra.mxu0 0.0
    %1531 = vmatpush.msra.mxu0 0.0
    %1532 = vmatpush.msra.mxu0 0.0
    %1533 = vmatpush.msra.mxu0 0.0
    %1534 = vmatpush.msra.mxu0 0.0
    %1535 = vmatpush.msra.mxu0 0.0
    %1536 = vmatpush.msra.mxu0 0.0
    %1537 = vmatpush.msra.mxu0 0.0
    %1538 = vmatpush.msra.mxu0 %v1518
    %1539 = vmatmul.f32.gmra.mxu0 %v1521
    %v1540 = vpop.f32.mrf.mxu0
    %v1541 = vadd.f32 0.0, %v1540
    %1542 = vdwg.mxu0
    %v1544 = vsel %vm174, %v1515, 0
    %v1547 = vsel %vm174, %v1541, 0
    %1549 = vmatpush.msra.mxu0 0.0
    %1550 = vmatpush.msra.mxu0 0.0
    %1551 = vmatpush.msra.mxu0 0.0
    %1552 = vmatpush.msra.mxu0 0.0
    %1553 = vmatpush.msra.mxu0 0.0
    %1554 = vmatpush.msra.mxu0 0.0
    %1555 = vmatpush.msra.mxu0 0.0
    %1556 = vmatpush.msra.mxu0 0.0
    %1557 = vmatpush.msra.mxu0 0.0
    %1558 = vmatpush.msra.mxu0 0.0
    %1559 = vmatpush.msra.mxu0 0.0
    %1560 = vmatpush.msra.mxu0 0.0
    %1561 = vmatpush.msra.mxu0 0.0
    %1562 = vmatpush.msra.mxu0 0.0
    %1563 = vmatpush.msra.mxu0 0.0
    %1564 = vmatpush.msra.mxu0 %v1080
    %1565 = vmatmul.f32.gmra.mxu0 %v1544
    %v1566 = vpop.f32.mrf.mxu0
    %v1567 = vadd.f32 0.0, %v1566
    %1568 = vmatmul.f32.gmra.mxu0 %v1547
    %v1569 = vpop.f32.mrf.mxu0
    %v1570 = vadd.f32 0.0, %v1569
    %1571 = vdwg.mxu0
    %v1572 = vadd.f32 %v1409, %v1567
    %v1573 = vadd.f32 %v1410, %v1570
    %1574 = vrot.lane.b32.xlu0 %v1072, 104
    %v1575 = vpop.permute.xlu0 %1574
    %1576 = vrot.lane.b32.xlu0 %v1072, 72
    %v1577 = vpop.permute.xlu0 %1576
    %v1578 = vsel %vm174, %v1575, 0
    %v1580 = vsel %vm174, %v1577, 0
    %1582 = vmatpush.xpose.msra.mxu0 0.0
    %1583 = vmatpush.xpose.msra.mxu0 0.0
    %1584 = vmatpush.xpose.msra.mxu0 0.0
    %1585 = vmatpush.xpose.msra.mxu0 0.0
    %1586 = vmatpush.xpose.msra.mxu0 0.0
    %1587 = vmatpush.xpose.msra.mxu0 0.0
    %1588 = vmatpush.xpose.msra.mxu0 0.0
    %1589 = vmatpush.xpose.msra.mxu0 0.0
    %1590 = vmatpush.xpose.msra.mxu0 0.0
    %1591 = vmatpush.xpose.msra.mxu0 0.0
    %1592 = vmatpush.xpose.msra.mxu0 0.0
    %1593 = vmatpush.xpose.msra.mxu0 0.0
    %1594 = vmatpush.xpose.msra.mxu0 0.0
    %1595 = vmatpush.xpose.msra.mxu0 0.0
    %1596 = vmatpush.xpose.msra.mxu0 0.0
    %1597 = vmatpush.xpose.msra.mxu0 %v1580
    %1598 = vmatmul.f32.gmra.mxu0 %v1578
    %v1599 = vpop.f32.mrf.mxu0
    %v1600 = vadd.f32 0.0, %v1599
    %1601 = vdwg.mxu0
    %1602 = vrot.lane.b32.xlu0 %v1075, 104
    %v1603 = vpop.permute.xlu0 %1602
    %1604 = vrot.lane.b32.xlu0 %v1075, 72
    %v1605 = vpop.permute.xlu0 %1604
    %v1606 = vsel %vm174, %v1603, 0
    %v1608 = vsel %vm174, %v1605, 0
    %1610 = vmatpush.xpose.msra.mxu0 0.0
    %1611 = vmatpush.xpose.msra.mxu0 0.0
    %1612 = vmatpush.xpose.msra.mxu0 0.0
    %1613 = vmatpush.xpose.msra.mxu0 0.0
    %1614 = vmatpush.xpose.msra.mxu0 0.0
    %1615 = vmatpush.xpose.msra.mxu0 0.0
    %1616 = vmatpush.xpose.msra.mxu0 0.0
    %1617 = vmatpush.xpose.msra.mxu0 0.0
    %1618 = vmatpush.xpose.msra.mxu0 0.0
    %1619 = vmatpush.xpose.msra.mxu0 0.0
    %1620 = vmatpush.xpose.msra.mxu0 0.0
    %1621 = vmatpush.xpose.msra.mxu0 0.0
    %1622 = vmatpush.xpose.msra.mxu0 0.0
    %1623 = vmatpush.xpose.msra.mxu0 0.0
    %1624 = vmatpush.xpose.msra.mxu0 0.0
    %1625 = vmatpush.xpose.msra.mxu0 %v1608
    %1626 = vmatmul.f32.gmra.mxu0 %v1606
    %v1627 = vpop.f32.mrf.mxu0
    %v1628 = vadd.f32 0.0, %v1627
    %1629 = vdwg.mxu0
    %v1630 = vmul.f32 %v1600, 0.35355338
    %v1631 = vmul.f32 %v1628, 0.35355338
    %v1632 = vsel %vm174, %v1630, -inf
    %1633 = vmax.xlane.f32.xlu0 %v1632
    %v1634 = vpop.xlane.xlu0 %1633
    %v1635 = vsel %vm174, %v1631, -inf
    %1636 = vmax.xlane.f32.xlu0 %v1635
    %v1637 = vpop.xlane.xlu0 %1636
    %v1638 = vsub.f32 %v1630, %v1634
    %v1639 = vsub.f32 %v1631, %v1637
    %v1640 = vmul.f32 %v1638, 1.442695
    %v1641 = vpow.pop %v1640
    %v1642 = vmul.f32 %v1639, 1.442695
    %v1643 = vpow.pop %v1642
    %v1644 = vsel %vm174, %v1641, 0.0
    %1645 = vadd.xlane.f32.xlu0 %v1644
    %v1646 = vpop.xlane.xlu0 %1645
    %v1647 = vsel %vm174, %v1643, 0.0
    %1648 = vadd.xlane.f32.xlu0 %v1647
    %v1649 = vpop.xlane.xlu0 %1648
    %v1650 = vrcp.pop %v1646
    %v1651 = vrcp.pop %v1649
    %v1652 = vmul.f32 %v1641, %v1650
    %v1653 = vmul.f32 %v1643, %v1651
    %1654 = vrot.lane.b32.xlu0 %v1072, 40
    %v1655 = vpop.permute.xlu0 %1654
    %v1658 = vsel %vm174, %v1652, 0
    %1660 = vmatpush.msra.mxu0 0.0
    %1661 = vmatpush.msra.mxu0 0.0
    %1662 = vmatpush.msra.mxu0 0.0
    %1663 = vmatpush.msra.mxu0 0.0
    %1664 = vmatpush.msra.mxu0 0.0
    %1665 = vmatpush.msra.mxu0 0.0
    %1666 = vmatpush.msra.mxu0 0.0
    %1667 = vmatpush.msra.mxu0 0.0
    %1668 = vmatpush.msra.mxu0 0.0
    %1669 = vmatpush.msra.mxu0 0.0
    %1670 = vmatpush.msra.mxu0 0.0
    %1671 = vmatpush.msra.mxu0 0.0
    %1672 = vmatpush.msra.mxu0 0.0
    %1673 = vmatpush.msra.mxu0 0.0
    %1674 = vmatpush.msra.mxu0 0.0
    %1675 = vmatpush.msra.mxu0 %v1655
    %1676 = vmatmul.f32.gmra.mxu0 %v1658
    %v1677 = vpop.f32.mrf.mxu0
    %v1678 = vadd.f32 0.0, %v1677
    %1679 = vdwg.mxu0
    %1680 = vrot.lane.b32.xlu0 %v1075, 40
    %v1681 = vpop.permute.xlu0 %1680
    %v1684 = vsel %vm174, %v1653, 0
    %1686 = vmatpush.msra.mxu0 0.0
    %1687 = vmatpush.msra.mxu0 0.0
    %1688 = vmatpush.msra.mxu0 0.0
    %1689 = vmatpush.msra.mxu0 0.0
    %1690 = vmatpush.msra.mxu0 0.0
    %1691 = vmatpush.msra.mxu0 0.0
    %1692 = vmatpush.msra.mxu0 0.0
    %1693 = vmatpush.msra.mxu0 0.0
    %1694 = vmatpush.msra.mxu0 0.0
    %1695 = vmatpush.msra.mxu0 0.0
    %1696 = vmatpush.msra.mxu0 0.0
    %1697 = vmatpush.msra.mxu0 0.0
    %1698 = vmatpush.msra.mxu0 0.0
    %1699 = vmatpush.msra.mxu0 0.0
    %1700 = vmatpush.msra.mxu0 0.0
    %1701 = vmatpush.msra.mxu0 %v1681
    %1702 = vmatmul.f32.gmra.mxu0 %v1684
    %v1703 = vpop.f32.mrf.mxu0
    %v1704 = vadd.f32 0.0, %v1703
    %1705 = vdwg.mxu0
    %v1707 = vsel %vm174, %v1678, 0
    %v1710 = vsel %vm174, %v1704, 0
    %1712 = vmatpush.msra.mxu0 0.0
    %1713 = vmatpush.msra.mxu0 0.0
    %1714 = vmatpush.msra.mxu0 0.0
    %1715 = vmatpush.msra.mxu0 0.0
    %1716 = vmatpush.msra.mxu0 0.0
    %1717 = vmatpush.msra.mxu0 0.0
    %1718 = vmatpush.msra.mxu0 0.0
    %1719 = vmatpush.msra.mxu0 0.0
    %1720 = vmatpush.msra.mxu0 0.0
    %1721 = vmatpush.msra.mxu0 0.0
    %1722 = vmatpush.msra.mxu0 0.0
    %1723 = vmatpush.msra.mxu0 0.0
    %1724 = vmatpush.msra.mxu0 0.0
    %1725 = vmatpush.msra.mxu0 0.0
    %1726 = vmatpush.msra.mxu0 0.0
    %1727 = vmatpush.msra.mxu0 %v1081
    %1728 = vmatmul.f32.gmra.mxu0 %v1707
    %v1729 = vpop.f32.mrf.mxu0
    %v1730 = vadd.f32 0.0, %v1729
    %1731 = vmatmul.f32.gmra.mxu0 %v1710
    %v1732 = vpop.f32.mrf.mxu0
    %v1733 = vadd.f32 0.0, %v1732
    %1734 = vdwg.mxu0
    %v1735 = vadd.f32 %v1572, %v1730
    %v1736 = vadd.f32 %v1573, %v1733
    %v1737 = vadd.f32 %v1735, %v1036
    %v1738 = vadd.f32 %v1736, %v1037
    %s1739 = scalar_lea.vmem %s7, 1
    %v1740 = vld [vmem:[%s1739] sm:$0x1]
    %s1741 = scalar_lea.vmem %s8, 1
    %v1742 = vld [vmem:[%s1741] sm:$0x1]
    %v1743 = vsel %vm67, %v1737, 0.0
    %1744 = vadd.xlane.f32.xlu0 %v1743
    %v1745 = vpop.xlane.xlu0 %1744
    %v1746 = vsel %vm67, %v1738, 0.0
    %1747 = vadd.xlane.f32.xlu0 %v1746
    %v1748 = vpop.xlane.xlu0 %1747
    %v1749 = vmul.f32 %v1745, %v80
    %v1750 = vmul.f32 %v1748, %v80
    %v1751 = vsub.f32 %v1737, %v1749
    %v1752 = vsub.f32 %v1738, %v1750
    %v1753 = vmul.f32 %v1751, %v1751
    %v1754 = vmul.f32 %v1752, %v1752
    %v1755 = vsel %vm67, %v1753, 0.0
    %1756 = vadd.xlane.f32.xlu0 %v1755
    %v1757 = vpop.xlane.xlu0 %1756
    %v1758 = vsel %vm67, %v1754, 0.0
    %1759 = vadd.xlane.f32.xlu0 %v1758
    %v1760 = vpop.xlane.xlu0 %1759
    %v1761 = vmul.f32 %v1757, %v80
    %v1762 = vmul.f32 %v1760, %v80
    %v1763 = vadd.f32 %v1761, 1e-12
    %v1764 = vadd.f32 %v1762, 1e-12
    %v1765 = vrsqrt.pop %v1763
    %v1766 = vmul.f32 %v1765, %v1763
    %v1767 = vmul.f32 %v1766, %v1765
    %v1768 = vmul.f32 0.5, %v1767
    %v1769 = vsub.f32 1.5, %v1768
    %v1770 = vmul.f32 %v1765, %v1769
    %vm1771 = vweird.f32 %v1763
    %vm1772 = vweird.f32 %v1765
    %vm1773 = vmor %vm1771, %vm1772
    %v1774 = vsel %vm1773, %v1765, %v1770
    %v1775 = vrsqrt.pop %v1764
    %v1776 = vmul.f32 %v1775, %v1764
    %v1777 = vmul.f32 %v1776, %v1775
    %v1778 = vmul.f32 0.5, %v1777
    %v1779 = vsub.f32 1.5, %v1778
    %v1780 = vmul.f32 %v1775, %v1779
    %vm1781 = vweird.f32 %v1764
    %vm1782 = vweird.f32 %v1775
    %vm1783 = vmor %vm1781, %vm1782
    %v1784 = vsel %vm1783, %v1775, %v1780
    %v1785 = vmul.f32 %v1751, %v1774
    %v1786 = vmul.f32 %v1752, %v1784
    %v1788 = vperm.slane %v1740, 0
    %v1790 = vmul.f32 %v1785, %v1788
    %v1791 = vmul.f32 %v1786, %v1788
    %v1793 = vperm.slane %v1742, 0
    %v1795 = vadd.f32 %v1790, %v1793
    %v1796 = vadd.f32 %v1791, %v1793
    %s1797 = scalar_lea.vmem %s9, 32
    %v1798 = vld [vmem:[%s1797] sm:$0xff]
    %v1799 = vld [vmem:[%s1797 + $0x8] sm:$0xff]
    %v1800 = vld [vmem:[%s1797 + $0x10] sm:$0xff]
    %v1801 = vld [vmem:[%s1797 + $0x18] sm:$0xff]
    %s1802 = scalar_lea.vmem %s10, 1
    %v1803 = vld [vmem:[%s1802] sm:$0x1]
    %v1805 = vperm.slane %v1803, 0
    %v1808 = vsel %vm67, %v1795, 0
    %v1811 = vsel %vm67, %v1796, 0
    %1813 = vmatpush.msra.mxu0 0.0
    %1814 = vmatpush.msra.mxu0 0.0
    %1815 = vmatpush.msra.mxu0 0.0
    %1816 = vmatpush.msra.mxu0 0.0
    %1817 = vmatpush.msra.mxu0 0.0
    %1818 = vmatpush.msra.mxu0 0.0
    %1819 = vmatpush.msra.mxu0 0.0
    %1820 = vmatpush.msra.mxu0 0.0
    %1821 = vmatpush.msra.mxu0 0.0
    %1822 = vmatpush.msra.mxu0 0.0
    %1823 = vmatpush.msra.mxu0 0.0
    %1824 = vmatpush.msra.mxu0 0.0
    %1825 = vmatpush.msra.mxu0 %v1801
    %1826 = vmatpush.msra.mxu0 %v1800
    %1827 = vmatpush.msra.mxu0 %v1799
    %1828 = vmatpush.msra.mxu0 %v1798
    %1829 = vmatmul.f32.gmra.mxu0 %v1808
    %v1830 = vpop.f32.mrf.mxu0
    %v1831 = vadd.f32 %v1805, %v1830
    %1832 = vmatmul.f32.gmra.mxu0 %v1811
    %v1833 = vpop.f32.mrf.mxu0
    %v1834 = vadd.f32 %v1805, %v1833
    %1835 = vdwg.mxu0
    %v1836 = vmul.f32 %v1831, 0.5
    %v1837 = vmul.f32 %v1834, 0.5
    %v1838 = vmul.f32 %v1831, 0.044715
    %v1839 = vmul.f32 %v1834, 0.044715
    %v1840 = vmul.f32 %v1838, %v1831
    %v1841 = vmul.f32 %v1839, %v1834
    %v1842 = vmul.f32 %v1840, %v1831
    %v1843 = vmul.f32 %v1841, %v1834
    %v1844 = vadd.f32 %v1831, %v1842
    %v1845 = vadd.f32 %v1834, %v1843
    %v1846 = vmul.f32 %v1844, 0.7978846
    %v1847 = vmul.f32 %v1845, 0.7978846
    %v1848 = vtanh.pop %v1846
    %v1849 = vtanh.pop %v1847
    %v1850 = vadd.f32 %v1848, 1.0
    %v1851 = vadd.f32 %v1849, 1.0
    %v1852 = vmul.f32 %v1836, %v1850
    %v1853 = vmul.f32 %v1837, %v1851
    %s1854 = scalar_lea.vmem %s11, 64
    %v1855 = vld [vmem:[%s1854] sm:$0xff]
    %v1856 = vld [vmem:[%s1854 + $0x8] sm:$0xff]
    %v1857 = vld [vmem:[%s1854 + $0x10] sm:$0xff]
    %v1858 = vld [vmem:[%s1854 + $0x18] sm:$0xff]
    %v1859 = vld [vmem:[%s1854 + $0x20] sm:$0xff]
    %v1860 = vld [vmem:[%s1854 + $0x28] sm:$0xff]
    %v1861 = vld [vmem:[%s1854 + $0x30] sm:$0xff]
    %v1862 = vld [vmem:[%s1854 + $0x38] sm:$0xff]
    %s1863 = scalar_lea.vmem %s12, 1
    %v1864 = vld [vmem:[%s1863] sm:$0x1]
    %v1866 = vperm.slane %v1864, 0
    %v1869 = vsel %vm950, %v1852, 0
    %v1872 = vsel %vm950, %v1853, 0
    %1874 = vmatpush.msra.mxu0 0.0
    %1875 = vmatpush.msra.mxu0 0.0
    %1876 = vmatpush.msra.mxu0 0.0
    %1877 = vmatpush.msra.mxu0 0.0
    %1878 = vmatpush.msra.mxu0 0.0
    %1879 = vmatpush.msra.mxu0 0.0
    %1880 = vmatpush.msra.mxu0 0.0
    %1881 = vmatpush.msra.mxu0 0.0
    %1882 = vmatpush.msra.mxu0 %v1862
    %1883 = vmatpush.msra.mxu0 %v1861
    %1884 = vmatpush.msra.mxu0 %v1860
    %1885 = vmatpush.msra.mxu0 %v1859
    %1886 = vmatpush.msra.mxu0 %v1858
    %1887 = vmatpush.msra.mxu0 %v1857
    %1888 = vmatpush.msra.mxu0 %v1856
    %1889 = vmatpush.msra.mxu0 %v1855
    %1890 = vmatmul.f32.gmra.mxu0 %v1869
    %v1891 = vpop.f32.mrf.mxu0
    %v1892 = vadd.f32 %v1866, %v1891
    %1893 = vmatmul.f32.gmra.mxu0 %v1872
    %v1894 = vpop.f32.mrf.mxu0
    %v1895 = vadd.f32 %v1866, %v1894
    %1896 = vdwg.mxu0
    %v1897 = vadd.f32 %v1892, %v1795
    %v1898 = vadd.f32 %v1895, %v1796
    %s1899 = scalar_lea.vmem %s13, 1
    %v1900 = vld [vmem:[%s1899] sm:$0x1]
    %s1901 = scalar_lea.vmem %s14, 1
    %v1902 = vld [vmem:[%s1901] sm:$0x1]
    %v1903 = vsel %vm67, %v1897, 0.0
    %1904 = vadd.xlane.f32.xlu0 %v1903
    %v1905 = vpop.xlane.xlu0 %1904
    %v1906 = vsel %vm67, %v1898, 0.0
    %1907 = vadd.xlane.f32.xlu0 %v1906
    %v1908 = vpop.xlane.xlu0 %1907
    %v1909 = vmul.f32 %v1905, %v80
    %v1910 = vmul.f32 %v1908, %v80
    %v1911 = vsub.f32 %v1897, %v1909
    %v1912 = vsub.f32 %v1898, %v1910
    %v1913 = vmul.f32 %v1911, %v1911
    %v1914 = vmul.f32 %v1912, %v1912
    %v1915 = vsel %vm67, %v1913, 0.0
    %1916 = vadd.xlane.f32.xlu0 %v1915
    %v1917 = vpop.xlane.xlu0 %1916
    %v1918 = vsel %vm67, %v1914, 0.0
    %1919 = vadd.xlane.f32.xlu0 %v1918
    %v1920 = vpop.xlane.xlu0 %1919
    %v1921 = vmul.f32 %v1917, %v80
    %v1922 = vmul.f32 %v1920, %v80
    %v1923 = vadd.f32 %v1921, 1e-12
    %v1924 = vadd.f32 %v1922, 1e-12
    %v1925 = vrsqrt.pop %v1923
    %v1926 = vmul.f32 %v1925, %v1923
    %v1927 = vmul.f32 %v1926, %v1925
    %v1928 = vmul.f32 0.5, %v1927
    %v1929 = vsub.f32 1.5, %v1928
    %v1930 = vmul.f32 %v1925, %v1929
    %vm1931 = vweird.f32 %v1923
    %vm1932 = vweird.f32 %v1925
    %vm1933 = vmor %vm1931, %vm1932
    %v1934 = vsel %vm1933, %v1925, %v1930
    %v1935 = vrsqrt.pop %v1924
    %v1936 = vmul.f32 %v1935, %v1924
    %v1937 = vmul.f32 %v1936, %v1935
    %v1938 = vmul.f32 0.5, %v1937
    %v1939 = vsub.f32 1.5, %v1938
    %v1940 = vmul.f32 %v1935, %v1939
    %vm1941 = vweird.f32 %v1924
    %vm1942 = vweird.f32 %v1935
    %vm1943 = vmor %vm1941, %vm1942
    %v1944 = vsel %vm1943, %v1935, %v1940
    %v1945 = vmul.f32 %v1911, %v1934
    %v1946 = vmul.f32 %v1912, %v1944
    %v1948 = vperm.slane %v1900, 0
    %v1950 = vmul.f32 %v1945, %v1948
    %v1951 = vmul.f32 %v1946, %v1948
    %v1953 = vperm.slane %v1902, 0
    %v1955 = vadd.f32 %v1950, %v1953
    %v1956 = vadd.f32 %v1951, %v1953
    %v1957 = vld [vmem:[%s15] sm:$0xff]
    %v1958 = vld [vmem:[%s15 + $0x8] sm:$0xff]
    %v1959 = vld [vmem:[%s15 + $0x10] sm:$0xff]
    %v1960 = vld [vmem:[%s15 + $0x18] sm:$0xff]
    %v1961 = vld [vmem:[%s16] sm:$0x1]
    %v1963 = vperm.slane %v1961, 0
    %v1967 = vrot.slane %v1956, 7
    %vm1968 = vcmask 1041409
    %v1969 = vsel %vm1968, %v1967, %v1955
    %v1970 = vsel %vm67, %v1969, 0
    %1972 = vmatpush.msra.mxu0 0.0
    %1973 = vmatpush.msra.mxu0 0.0
    %1974 = vmatpush.msra.mxu0 0.0
    %1975 = vmatpush.msra.mxu0 0.0
    %1976 = vmatpush.msra.mxu0 0.0
    %1977 = vmatpush.msra.mxu0 0.0
    %1978 = vmatpush.msra.mxu0 0.0
    %1979 = vmatpush.msra.mxu0 0.0
    %1980 = vmatpush.msra.mxu0 0.0
    %1981 = vmatpush.msra.mxu0 0.0
    %1982 = vmatpush.msra.mxu0 0.0
    %1983 = vmatpush.msra.mxu0 0.0
    %1984 = vmatpush.msra.mxu0 %v1960
    %1985 = vmatpush.msra.mxu0 %v1959
    %1986 = vmatpush.msra.mxu0 %v1958
    %1987 = vmatpush.msra.mxu0 %v1957
    %1988 = vmatmul.f32.gmra.mxu0 %v1970
    %v1989 = vpop.f32.mrf.mxu0
    %v1990 = vadd.f32 %v1963, %v1989
    %1991 = vdwg.mxu0
    %v1992 = vtanh.pop %v1990
    %v1993 = vld [vmem:[%s17] sm:$0xff]
    %v1994 = vld [vmem:[%s17 + $0x8] sm:$0xff]
    %v1995 = vld [vmem:[%s17 + $0x10] sm:$0xff]
    %v1996 = vld [vmem:[%s17 + $0x18] sm:$0xff]
    %v1997 = vld [vmem:[%s18] sm:$0x1]
    %v1999 = vperm.slane %v1997, 0
    %v2002 = vsel %vm67, %v1992, 0
    %2004 = vmatpush.msra.mxu0 0.0
    %2005 = vmatpush.msra.mxu0 0.0
    %2006 = vmatpush.msra.mxu0 0.0
    %2007 = vmatpush.msra.mxu0 0.0
    %2008 = vmatpush.msra.mxu0 0.0
    %2009 = vmatpush.msra.mxu0 0.0
    %2010 = vmatpush.msra.mxu0 0.0
    %2011 = vmatpush.msra.mxu0 0.0
    %2012 = vmatpush.msra.mxu0 0.0
    %2013 = vmatpush.msra.mxu0 0.0
    %2014 = vmatpush.msra.mxu0 0.0
    %2015 = vmatpush.msra.mxu0 0.0
    %2016 = vmatpush.msra.mxu0 %v1996
    %2017 = vmatpush.msra.mxu0 %v1995
    %2018 = vmatpush.msra.mxu0 %v1994
    %2019 = vmatpush.msra.mxu0 %v1993
    %2020 = vmatmul.f32.gmra.mxu0 %v2002
    %v2021 = vpop.f32.mrf.mxu0
    %v2022 = vadd.f32 %v1999, %v2021
    %2023 = vdwg.mxu0
    %2024 = vst [vmem:[#allocation2] sm:$0x3] %v2022
    // Predicated region
    $region78: #{bert_classification_forward.1} parent=1 // pred_check
      _
    $region79: #{bert_classification_forward.1} parent=1 // pred_check_branch
      %2026 = sbr.rel (0) target = $region81
    $region80: #{bert_classification_forward.1} parent=1 // pred_region
      %2028 = vsyncadd [#allocation3], 0
      %s2030 = sshll.u32 [#allocation2], 4
      %s2031 = int_to_ptr.vmem [resolvable:$true] %s2030
      %s2032 = sshll.u32 %s19, 4
      %s2033 = int_to_ptr.hbm [resolvable:$true] %s2032
      %2035 = dma.vmem_to_hbm [thread:$0]  %s2031, 32, %s2033, [#allocation3]
    $region81: #{bert_classification_forward.1} parent=1 // pred_fallthru
      _
    // Predicated region
    $region82: #{bert_classification_forward.1} parent=1 // pred_check
      _
    $region83: #{bert_classification_forward.1} parent=1 // pred_check_branch
      %2037 = sbr.rel (0) target = $region85
    $region84: #{bert_classification_forward.1} parent=1 // pred_region
      %2039 = dma.done [#allocation3], 32
    $region85: #{bert_classification_forward.1} parent=1 // pred_fallthru
      _
    %2040 = vsyncpa [#allocation3], 1

</llo_original>
